<compile_context>
chip_gen: v6e
topology: v6e:2x2x1
jax: 0.10.0
libtpu: 0.0.40
codegen_flags: <defaults>
</compile_context>

<pallas_src>
import jax
import jax.numpy as jnp
from jax.experimental import pallas as pl
from jax.experimental.pallas import tpu as pltpu


# ----------------------------------------------------------------------------
# Fused Pallas kernel (whole network, single invocation)
# ----------------------------------------------------------------------------
def make_fused_gcn_kernel(num_layers, B, N, F, H):
    def kernel(*refs):
        # refs = [states, adj,
        #         (w, b, gamma, beta) * num_layers,
        #         w1_s, w1_x, b1, w2, b2,
        #         out]
        states_ref, adj_ref = refs[0], refs[1]
        layer_refs = refs[2:2 + 4 * num_layers]
        w1s_ref, w1x_ref, b1_ref, w2_ref, b2_ref = refs[2 + 4 * num_layers:-1]
        o_ref = refs[-1]

        states = states_ref[...].astype(jnp.float32)     # (B, N, F)
        adj = adj_ref[...].astype(jnp.float32)           # (B, N, N)

        # Adjacency row-normalization: hoisted, computed ONCE for all layers.
        adj_sum = jnp.sum(adj, axis=-1, keepdims=True) + 1e-8
        norm_adj = adj / adj_sum                          # (B, N, N)

        # Fold batch into rows for the dense linear paths.
        x = states.reshape(B * N, F)

        for l in range(num_layers):                       # static unroll
            w = layer_refs[4 * l][...]                    # (Din, 2*Dout) = [self | lin]
            b = layer_refs[4 * l + 1][...]                # (1, 2*Dout)
            g = layer_refs[4 * l + 2][...]                # (1, Dout)
            beta = layer_refs[4 * l + 3][...]             # (1, Dout)
            dout = g.shape[-1]

            # One MXU matmul for both the self and the neighbor linear path.
            fused = jnp.dot(x, w, preferred_element_type=jnp.float32) + b
            self_feat = fused[:, :dout].reshape(B, N, dout)
            lin_feat = fused[:, dout:].reshape(B, N, dout)

            # Per-batch bmm with the (pre-normalized) adjacency.
            neigh = jnp.einsum("bij,bjd->bid", norm_adj, lin_feat,
                               preferred_element_type=jnp.float32)
            out = self_feat + neigh                       # (B, N, Dout)

            # LayerNorm over the last dim (eps = 1e-5, PyTorch default).
            mean = jnp.mean(out, axis=-1, keepdims=True)
            var = jnp.mean((out - mean) ** 2, axis=-1, keepdims=True)
            y = (out - mean) * jax.lax.rsqrt(var + 1e-5) * g + beta

            if l < num_layers - 1:                        # ReLU on all but last layer
                y = jnp.maximum(y, 0.0)
            x = y.reshape(B * N, dout)

        # Output MLP; the [states, x] concat is folded into two split matmuls.
        states_flat = states.reshape(B * N, F)
        h = (jnp.dot(states_flat, w1s_ref[...], preferred_element_type=jnp.float32)
             + jnp.dot(x, w1x_ref[...], preferred_element_type=jnp.float32)
             + b1_ref[...])
        h = jnp.maximum(h, 0.0)
        y = jnp.dot(h, w2_ref[...], preferred_element_type=jnp.float32) + b2_ref[...]

        # TODO(synk): output last dim F=4 is a masked (4/128-lane) store; pad to a
        # lane-dense slab only if the model config ever scales these dims up.
        o_ref[...] = y.reshape(B, N, F).astype(o_ref.dtype)

    return kernel


# ----------------------------------------------------------------------------
# Wrapper
# ----------------------------------------------------------------------------
def gcnetwork_forward(states, adj, packed):
    """Pallas implementation of GCNetwork.forward (single fused kernel)."""
    B, N, F = states.shape
    layers = packed["layers"]
    L = len(layers)
    out_p = packed["out"]
    H = out_p["w2"].shape[0]

    inputs = [states, adj]
    for lp in layers:
        inputs += [lp["w"], lp["b"], lp["g"], lp["beta"]]
    inputs += [out_p["w1_s"], out_p["w1_x"], out_p["b1"], out_p["w2"], out_p["b2"]]

    kernel = make_fused_gcn_kernel(L, B, N, F, H)
    vmem = lambda: pl.BlockSpec(memory_space=pltpu.MemorySpace.VMEM)

    return pl.pallas_call(
        kernel,
        out_shape=jax.ShapeDtypeStruct((B, N, F), jnp.float32),
        in_specs=[vmem() for _ in inputs],
        out_specs=vmem(),
    )(*inputs)


# ----------------------------------------------------------------------------
# Parameter init (unmerged, mirrors the PyTorch module) + one-time packing
# ----------------------------------------------------------------------------
def init_params(key, feature_dim, hidden_dim, num_layers):
    def linear(k, din, dout):
        k1, k2 = jax.random.split(k)
        w = jax.random.normal(k1, (din, dout), jnp.float32) * 0.1
        b = jax.random.normal(k2, (1, dout), jnp.float32) * 0.1
        return w, b

    dims = [(feature_dim, hidden_dim)] + [(hidden_dim, hidden_dim)] * (num_layers - 1)
    layers = []
    for (din, dout) in dims:
        key, k1, k2 = jax.random.split(key, 3)
        wl, bl = linear(k1, din, dout)       # self.linear (neighbor path)
        ws, bs = linear(k2, din, dout)       # self.self_transform
        layers.append(dict(
            w_lin=wl, b_lin=bl, w_self=ws, b_self=bs,
            ln_w=jnp.ones((1, dout), jnp.float32),
            ln_b=jnp.zeros((1, dout), jnp.float32),
        ))
    key, k1, k2 = jax.random.split(key, 3)
    w1, b1 = linear(k1, feature_dim + hidden_dim, hidden_dim)
    w2, b2 = linear(k2, hidden_dim, feature_dim)
    return dict(layers=layers, out=dict(w1=w1, b1=b1, w2=w2, b2=b2))


def pack_params(params, feature_dim):
    """One-time packing: merge self/lin weights, split w1 (removes the concat)."""
    packed_layers = []
    for lp in params["layers"]:
        packed_layers.append(dict(
            w=jnp.concatenate([lp["w_self"], lp["w_lin"]], axis=1),   # (Din, 2*Dout)
            b=jnp.concatenate([lp["b_self"], lp["b_lin"]], axis=1),   # (1, 2*Dout)
            g=lp["ln_w"], beta=lp["ln_b"],
        ))
    o = params["out"]
    packed_out = dict(
        w1_s=o["w1"][:feature_dim, :],    # (F, H)
        w1_x=o["w1"][feature_dim:, :],    # (H, H)
        b1=o["b1"], w2=o["w2"], b2=o["b2"],
    )
    return dict(layers=packed_layers, out=packed_out)


# ----------------------------------------------------------------------------
# Pure-JAX reference (unmerged params; matches the PyTorch module exactly)
# ----------------------------------------------------------------------------
def ref_forward(states, adj, params):
    def gcn(x, adj, p, relu):
        norm_adj = adj / (jnp.sum(adj, axis=-1, keepdims=True) + 1e-8)
        self_f = x @ p["w_self"] + p["b_self"]
        neigh = jnp.einsum("bij,bjd->bid", norm_adj, x @ p["w_lin"] + p["b_lin"])
        out = self_f + neigh
        mean = jnp.mean(out, -1, keepdims=True)
        var = jnp.mean((out - mean) ** 2, -1, keepdims=True)
        y = (out - mean) / jnp.sqrt(var + 1e-5) * p["ln_w"] + p["ln_b"]
        return jnp.maximum(y, 0.0) if relu else y

    x = states
    for lp in params["layers"][:-1]:
        x = gcn(x, adj, lp, True)
    x = gcn(x, adj, params["layers"][-1], False)
    c = jnp.concatenate([states, x], axis=-1)
    h = jnp.maximum(c @ params["out"]["w1"] + params["out"]["b1"], 0.0)
    return h @ params["out"]["w2"] + params["out"]["b2"]


# ----------------------------------------------------------------------------
if __name__ == "__main__":
    feature_dim, hidden_dim, num_layers = 4, 32, 3
    bs, body_num = 2, 8

    key = jax.random.PRNGKey(0)
    kp, ks, ka = jax.random.split(key, 3)
    params = init_params(kp, feature_dim, hidden_dim, num_layers)
    packed = pack_params(params, feature_dim)

    states = jax.random.normal(ks, (bs, body_num, feature_dim), jnp.float32)
    adj = jax.nn.sigmoid(jax.random.normal(ka, (bs, body_num, body_num), jnp.float32))

    fwd = jax.jit(gcnetwork_forward)
    out = jax.block_until_ready(fwd(states, adj, packed))
    ref = ref_forward(states, adj, params)

    assert out.shape == (bs, body_num, feature_dim)
    err = float(jnp.max(jnp.abs(out - ref)))
    assert jnp.allclose(out, ref, atol=1e-4, rtol=1e-4), err
    print("KERNEL_OK")
</pallas_src>

<mosaic_0001>
module attributes {stable_mosaic.version = 11 : i64} {
  func.func @kernel(%arg0: memref<2x8x4xf32, #tpu.memory_space<vmem>>, %arg1: memref<2x8x8xf32, #tpu.memory_space<vmem>>, %arg2: memref<4x64xf32, #tpu.memory_space<vmem>>, %arg3: memref<1x64xf32, #tpu.memory_space<vmem>>, %arg4: memref<1x32xf32, #tpu.memory_space<vmem>>, %arg5: memref<1x32xf32, #tpu.memory_space<vmem>>, %arg6: memref<32x64xf32, #tpu.memory_space<vmem>>, %arg7: memref<1x64xf32, #tpu.memory_space<vmem>>, %arg8: memref<1x32xf32, #tpu.memory_space<vmem>>, %arg9: memref<1x32xf32, #tpu.memory_space<vmem>>, %arg10: memref<32x64xf32, #tpu.memory_space<vmem>>, %arg11: memref<1x64xf32, #tpu.memory_space<vmem>>, %arg12: memref<1x32xf32, #tpu.memory_space<vmem>>, %arg13: memref<1x32xf32, #tpu.memory_space<vmem>>, %arg14: memref<4x32xf32, #tpu.memory_space<vmem>>, %arg15: memref<32x32xf32, #tpu.memory_space<vmem>>, %arg16: memref<1x32xf32, #tpu.memory_space<vmem>>, %arg17: memref<32x4xf32, #tpu.memory_space<vmem>>, %arg18: memref<1x4xf32, #tpu.memory_space<vmem>>, %arg19: memref<2x8x4xf32, #tpu.memory_space<vmem>>) attributes {dimension_semantics = [], scalar_prefetch = 0 : i64, scratch_operands = 0 : i64, tpu.core_type = #tpu.core_type<tc>} {
    %c0 = arith.constant 0 : index
    %c0_0 = arith.constant 0 : index
    %c0_1 = arith.constant 0 : index
    %0 = vector.load %arg0[%c0, %c0_0, %c0_1] : memref<2x8x4xf32, #tpu.memory_space<vmem>>, vector<2x8x4xf32>
    %c0_2 = arith.constant 0 : index
    %c0_3 = arith.constant 0 : index
    %c0_4 = arith.constant 0 : index
    %1 = vector.load %arg1[%c0_2, %c0_3, %c0_4] : memref<2x8x8xf32, #tpu.memory_space<vmem>>, vector<2x8x8xf32>
    %cst = arith.constant dense<0.000000e+00> : vector<2x8xf32>
    %2 = vector.multi_reduction <add>, %1, %cst [2] : vector<2x8x8xf32> to vector<2x8xf32>
    %3 = vector.shape_cast %2 : vector<2x8xf32> to vector<2x8x1xf32>
    %cst_5 = arith.constant 9.99999993E-9 : f32
    %4 = vector.broadcast %cst_5 : f32 to vector<2x8x1xf32>
    %5 = arith.addf %3, %4 : vector<2x8x1xf32>
    %6 = vector.broadcast %5 : vector<2x8x1xf32> to vector<2x8x8xf32>
    %7 = arith.divf %1, %6 : vector<2x8x8xf32>
    %8 = vector.shape_cast %0 : vector<2x8x4xf32> to vector<16x4xf32>
    %c0_6 = arith.constant 0 : index
    %c0_7 = arith.constant 0 : index
    %9 = vector.load %arg2[%c0_6, %c0_7] : memref<4x64xf32, #tpu.memory_space<vmem>>, vector<4x64xf32>
    %c0_8 = arith.constant 0 : index
    %c0_9 = arith.constant 0 : index
    %10 = vector.load %arg3[%c0_8, %c0_9] : memref<1x64xf32, #tpu.memory_space<vmem>>, vector<1x64xf32>
    %c0_10 = arith.constant 0 : index
    %c0_11 = arith.constant 0 : index
    %11 = vector.load %arg4[%c0_10, %c0_11] : memref<1x32xf32, #tpu.memory_space<vmem>>, vector<1x32xf32>
    %c0_12 = arith.constant 0 : index
    %c0_13 = arith.constant 0 : index
    %12 = vector.load %arg5[%c0_12, %c0_13] : memref<1x32xf32, #tpu.memory_space<vmem>>, vector<1x32xf32>
    %cst_14 = arith.constant dense<0.000000e+00> : vector<16x64xf32>
    %13 = tpu.matmul %8, %9, %cst_14 {dimension_numbers = #tpu.dot_dimension_numbers<[1], [0], [0], [1], [0, 0, 1, 1], [], []>} : vector<16x4xf32>, vector<4x64xf32>, vector<16x64xf32> -> vector<16x64xf32>
    %14 = vector.broadcast %10 : vector<1x64xf32> to vector<16x64xf32>
    %15 = arith.addf %13, %14 : vector<16x64xf32>
    %16 = vector.extract_strided_slice %15 {offsets = [0, 0], sizes = [16, 32], strides = [1, 1]} : vector<16x64xf32> to vector<16x32xf32>
    %17 = vector.shape_cast %16 : vector<16x32xf32> to vector<2x8x32xf32>
    %18 = vector.extract_strided_slice %15 {offsets = [0, 32], sizes = [16, 32], strides = [1, 1]} : vector<16x64xf32> to vector<16x32xf32>
    %19 = vector.shape_cast %18 : vector<16x32xf32> to vector<2x8x32xf32>
    "tpu.trace_start"() <{level = 10 : i32, message = "bij,bjd->bid"}> : () -> ()
    %cst_15 = arith.constant dense<0.000000e+00> : vector<2x8x32xf32>
    %20 = tpu.matmul %7, %19, %cst_15 {dimension_numbers = #tpu.dot_dimension_numbers<[2], [1], [1], [2], [0, 0, 0, 1, 1, 2], [0], [0]>} : vector<2x8x8xf32>, vector<2x8x32xf32>, vector<2x8x32xf32> -> vector<2x8x32xf32>
    "tpu.trace_stop"() : () -> ()
    %21 = arith.addf %17, %20 : vector<2x8x32xf32>
    %cst_16 = arith.constant dense<0.000000e+00> : vector<2x8xf32>
    %22 = vector.multi_reduction <add>, %21, %cst_16 [2] : vector<2x8x32xf32> to vector<2x8xf32>
    %23 = vector.shape_cast %22 : vector<2x8xf32> to vector<2x8x1xf32>
    %cst_17 = arith.constant 3.200000e+01 : f32
    %24 = vector.broadcast %cst_17 : f32 to vector<2x8x1xf32>
    %25 = arith.divf %23, %24 : vector<2x8x1xf32>
    %26 = vector.broadcast %25 : vector<2x8x1xf32> to vector<2x8x32xf32>
    %27 = arith.subf %21, %26 : vector<2x8x32xf32>
    %28 = arith.mulf %27, %27 : vector<2x8x32xf32>
    %cst_18 = arith.constant dense<0.000000e+00> : vector<2x8xf32>
    %29 = vector.multi_reduction <add>, %28, %cst_18 [2] : vector<2x8x32xf32> to vector<2x8xf32>
    %30 = vector.shape_cast %29 : vector<2x8xf32> to vector<2x8x1xf32>
    %cst_19 = arith.constant 3.200000e+01 : f32
    %31 = vector.broadcast %cst_19 : f32 to vector<2x8x1xf32>
    %32 = arith.divf %30, %31 : vector<2x8x1xf32>
    %33 = vector.broadcast %25 : vector<2x8x1xf32> to vector<2x8x32xf32>
    %34 = arith.subf %21, %33 : vector<2x8x32xf32>
    %cst_20 = arith.constant 9.99999974E-6 : f32
    %35 = vector.broadcast %cst_20 : f32 to vector<2x8x1xf32>
    %36 = arith.addf %32, %35 : vector<2x8x1xf32>
    %37 = math.rsqrt %36 : vector<2x8x1xf32>
    %38 = vector.broadcast %37 : vector<2x8x1xf32> to vector<2x8x32xf32>
    %39 = arith.mulf %34, %38 : vector<2x8x32xf32>
    %40 = vector.shape_cast %11 : vector<1x32xf32> to vector<1x1x32xf32>
    %41 = vector.broadcast %40 : vector<1x1x32xf32> to vector<2x8x32xf32>
    %42 = arith.mulf %39, %41 : vector<2x8x32xf32>
    %43 = vector.shape_cast %12 : vector<1x32xf32> to vector<1x1x32xf32>
    %44 = vector.broadcast %43 : vector<1x1x32xf32> to vector<2x8x32xf32>
    %45 = arith.addf %42, %44 : vector<2x8x32xf32>
    %cst_21 = arith.constant 0.000000e+00 : f32
    %46 = vector.broadcast %cst_21 : f32 to vector<2x8x32xf32>
    %47 = arith.maximumf %45, %46 : vector<2x8x32xf32>
    %48 = vector.shape_cast %47 : vector<2x8x32xf32> to vector<16x32xf32>
    %c0_22 = arith.constant 0 : index
    %c0_23 = arith.constant 0 : index
    %49 = vector.load %arg6[%c0_22, %c0_23] : memref<32x64xf32, #tpu.memory_space<vmem>>, vector<32x64xf32>
    %c0_24 = arith.constant 0 : index
    %c0_25 = arith.constant 0 : index
    %50 = vector.load %arg7[%c0_24, %c0_25] : memref<1x64xf32, #tpu.memory_space<vmem>>, vector<1x64xf32>
    %c0_26 = arith.constant 0 : index
    %c0_27 = arith.constant 0 : index
    %51 = vector.load %arg8[%c0_26, %c0_27] : memref<1x32xf32, #tpu.memory_space<vmem>>, vector<1x32xf32>
    %c0_28 = arith.constant 0 : index
    %c0_29 = arith.constant 0 : index
    %52 = vector.load %arg9[%c0_28, %c0_29] : memref<1x32xf32, #tpu.memory_space<vmem>>, vector<1x32xf32>
    %cst_30 = arith.constant dense<0.000000e+00> : vector<16x64xf32>
    %53 = tpu.matmul %48, %49, %cst_30 {dimension_numbers = #tpu.dot_dimension_numbers<[1], [0], [0], [1], [0, 0, 1, 1], [], []>} : vector<16x32xf32>, vector<32x64xf32>, vector<16x64xf32> -> vector<16x64xf32>
    %54 = vector.broadcast %50 : vector<1x64xf32> to vector<16x64xf32>
    %55 = arith.addf %53, %54 : vector<16x64xf32>
    %56 = vector.extract_strided_slice %55 {offsets = [0, 0], sizes = [16, 32], strides = [1, 1]} : vector<16x64xf32> to vector<16x32xf32>
    %57 = vector.shape_cast %56 : vector<16x32xf32> to vector<2x8x32xf32>
    %58 = vector.extract_strided_slice %55 {offsets = [0, 32], sizes = [16, 32], strides = [1, 1]} : vector<16x64xf32> to vector<16x32xf32>
    %59 = vector.shape_cast %58 : vector<16x32xf32> to vector<2x8x32xf32>
    "tpu.trace_start"() <{level = 10 : i32, message = "bij,bjd->bid"}> : () -> ()
    %cst_31 = arith.constant dense<0.000000e+00> : vector<2x8x32xf32>
    %60 = tpu.matmul %7, %59, %cst_31 {dimension_numbers = #tpu.dot_dimension_numbers<[2], [1], [1], [2], [0, 0, 0, 1, 1, 2], [0], [0]>} : vector<2x8x8xf32>, vector<2x8x32xf32>, vector<2x8x32xf32> -> vector<2x8x32xf32>
    "tpu.trace_stop"() : () -> ()
    %61 = arith.addf %57, %60 : vector<2x8x32xf32>
    %cst_32 = arith.constant dense<0.000000e+00> : vector<2x8xf32>
    %62 = vector.multi_reduction <add>, %61, %cst_32 [2] : vector<2x8x32xf32> to vector<2x8xf32>
    %63 = vector.shape_cast %62 : vector<2x8xf32> to vector<2x8x1xf32>
    %cst_33 = arith.constant 3.200000e+01 : f32
    %64 = vector.broadcast %cst_33 : f32 to vector<2x8x1xf32>
    %65 = arith.divf %63, %64 : vector<2x8x1xf32>
    %66 = vector.broadcast %65 : vector<2x8x1xf32> to vector<2x8x32xf32>
    %67 = arith.subf %61, %66 : vector<2x8x32xf32>
    %68 = arith.mulf %67, %67 : vector<2x8x32xf32>
    %cst_34 = arith.constant dense<0.000000e+00> : vector<2x8xf32>
    %69 = vector.multi_reduction <add>, %68, %cst_34 [2] : vector<2x8x32xf32> to vector<2x8xf32>
    %70 = vector.shape_cast %69 : vector<2x8xf32> to vector<2x8x1xf32>
    %cst_35 = arith.constant 3.200000e+01 : f32
    %71 = vector.broadcast %cst_35 : f32 to vector<2x8x1xf32>
    %72 = arith.divf %70, %71 : vector<2x8x1xf32>
    %73 = vector.broadcast %65 : vector<2x8x1xf32> to vector<2x8x32xf32>
    %74 = arith.subf %61, %73 : vector<2x8x32xf32>
    %cst_36 = arith.constant 9.99999974E-6 : f32
    %75 = vector.broadcast %cst_36 : f32 to vector<2x8x1xf32>
    %76 = arith.addf %72, %75 : vector<2x8x1xf32>
    %77 = math.rsqrt %76 : vector<2x8x1xf32>
    %78 = vector.broadcast %77 : vector<2x8x1xf32> to vector<2x8x32xf32>
    %79 = arith.mulf %74, %78 : vector<2x8x32xf32>
    %80 = vector.shape_cast %51 : vector<1x32xf32> to vector<1x1x32xf32>
    %81 = vector.broadcast %80 : vector<1x1x32xf32> to vector<2x8x32xf32>
    %82 = arith.mulf %79, %81 : vector<2x8x32xf32>
    %83 = vector.shape_cast %52 : vector<1x32xf32> to vector<1x1x32xf32>
    %84 = vector.broadcast %83 : vector<1x1x32xf32> to vector<2x8x32xf32>
    %85 = arith.addf %82, %84 : vector<2x8x32xf32>
    %cst_37 = arith.constant 0.000000e+00 : f32
    %86 = vector.broadcast %cst_37 : f32 to vector<2x8x32xf32>
    %87 = arith.maximumf %85, %86 : vector<2x8x32xf32>
    %88 = vector.shape_cast %87 : vector<2x8x32xf32> to vector<16x32xf32>
    %c0_38 = arith.constant 0 : index
    %c0_39 = arith.constant 0 : index
    %89 = vector.load %arg10[%c0_38, %c0_39] : memref<32x64xf32, #tpu.memory_space<vmem>>, vector<32x64xf32>
    %c0_40 = arith.constant 0 : index
    %c0_41 = arith.constant 0 : index
    %90 = vector.load %arg11[%c0_40, %c0_41] : memref<1x64xf32, #tpu.memory_space<vmem>>, vector<1x64xf32>
    %c0_42 = arith.constant 0 : index
    %c0_43 = arith.constant 0 : index
    %91 = vector.load %arg12[%c0_42, %c0_43] : memref<1x32xf32, #tpu.memory_space<vmem>>, vector<1x32xf32>
    %c0_44 = arith.constant 0 : index
    %c0_45 = arith.constant 0 : index
    %92 = vector.load %arg13[%c0_44, %c0_45] : memref<1x32xf32, #tpu.memory_space<vmem>>, vector<1x32xf32>
    %cst_46 = arith.constant dense<0.000000e+00> : vector<16x64xf32>
    %93 = tpu.matmul %88, %89, %cst_46 {dimension_numbers = #tpu.dot_dimension_numbers<[1], [0], [0], [1], [0, 0, 1, 1], [], []>} : vector<16x32xf32>, vector<32x64xf32>, vector<16x64xf32> -> vector<16x64xf32>
    %94 = vector.broadcast %90 : vector<1x64xf32> to vector<16x64xf32>
    %95 = arith.addf %93, %94 : vector<16x64xf32>
    %96 = vector.extract_strided_slice %95 {offsets = [0, 0], sizes = [16, 32], strides = [1, 1]} : vector<16x64xf32> to vector<16x32xf32>
    %97 = vector.shape_cast %96 : vector<16x32xf32> to vector<2x8x32xf32>
    %98 = vector.extract_strided_slice %95 {offsets = [0, 32], sizes = [16, 32], strides = [1, 1]} : vector<16x64xf32> to vector<16x32xf32>
    %99 = vector.shape_cast %98 : vector<16x32xf32> to vector<2x8x32xf32>
    "tpu.trace_start"() <{level = 10 : i32, message = "bij,bjd->bid"}> : () -> ()
    %cst_47 = arith.constant dense<0.000000e+00> : vector<2x8x32xf32>
    %100 = tpu.matmul %7, %99, %cst_47 {dimension_numbers = #tpu.dot_dimension_numbers<[2], [1], [1], [2], [0, 0, 0, 1, 1, 2], [0], [0]>} : vector<2x8x8xf32>, vector<2x8x32xf32>, vector<2x8x32xf32> -> vector<2x8x32xf32>
    "tpu.trace_stop"() : () -> ()
    %101 = arith.addf %97, %100 : vector<2x8x32xf32>
    %cst_48 = arith.constant dense<0.000000e+00> : vector<2x8xf32>
    %102 = vector.multi_reduction <add>, %101, %cst_48 [2] : vector<2x8x32xf32> to vector<2x8xf32>
    %103 = vector.shape_cast %102 : vector<2x8xf32> to vector<2x8x1xf32>
    %cst_49 = arith.constant 3.200000e+01 : f32
    %104 = vector.broadcast %cst_49 : f32 to vector<2x8x1xf32>
    %105 = arith.divf %103, %104 : vector<2x8x1xf32>
    %106 = vector.broadcast %105 : vector<2x8x1xf32> to vector<2x8x32xf32>
    %107 = arith.subf %101, %106 : vector<2x8x32xf32>
    %108 = arith.mulf %107, %107 : vector<2x8x32xf32>
    %cst_50 = arith.constant dense<0.000000e+00> : vector<2x8xf32>
    %109 = vector.multi_reduction <add>, %108, %cst_50 [2] : vector<2x8x32xf32> to vector<2x8xf32>
    %110 = vector.shape_cast %109 : vector<2x8xf32> to vector<2x8x1xf32>
    %cst_51 = arith.constant 3.200000e+01 : f32
    %111 = vector.broadcast %cst_51 : f32 to vector<2x8x1xf32>
    %112 = arith.divf %110, %111 : vector<2x8x1xf32>
    %113 = vector.broadcast %105 : vector<2x8x1xf32> to vector<2x8x32xf32>
    %114 = arith.subf %101, %113 : vector<2x8x32xf32>
    %cst_52 = arith.constant 9.99999974E-6 : f32
    %115 = vector.broadcast %cst_52 : f32 to vector<2x8x1xf32>
    %116 = arith.addf %112, %115 : vector<2x8x1xf32>
    %117 = math.rsqrt %116 : vector<2x8x1xf32>
    %118 = vector.broadcast %117 : vector<2x8x1xf32> to vector<2x8x32xf32>
    %119 = arith.mulf %114, %118 : vector<2x8x32xf32>
    %120 = vector.shape_cast %91 : vector<1x32xf32> to vector<1x1x32xf32>
    %121 = vector.broadcast %120 : vector<1x1x32xf32> to vector<2x8x32xf32>
    %122 = arith.mulf %119, %121 : vector<2x8x32xf32>
    %123 = vector.shape_cast %92 : vector<1x32xf32> to vector<1x1x32xf32>
    %124 = vector.broadcast %123 : vector<1x1x32xf32> to vector<2x8x32xf32>
    %125 = arith.addf %122, %124 : vector<2x8x32xf32>
    %126 = vector.shape_cast %125 : vector<2x8x32xf32> to vector<16x32xf32>
    %127 = vector.shape_cast %0 : vector<2x8x4xf32> to vector<16x4xf32>
    %c0_53 = arith.constant 0 : index
    %c0_54 = arith.constant 0 : index
    %128 = vector.load %arg14[%c0_53, %c0_54] : memref<4x32xf32, #tpu.memory_space<vmem>>, vector<4x32xf32>
    %cst_55 = arith.constant dense<0.000000e+00> : vector<16x32xf32>
    %129 = tpu.matmul %127, %128, %cst_55 {dimension_numbers = #tpu.dot_dimension_numbers<[1], [0], [0], [1], [0, 0, 1, 1], [], []>} : vector<16x4xf32>, vector<4x32xf32>, vector<16x32xf32> -> vector<16x32xf32>
    %c0_56 = arith.constant 0 : index
    %c0_57 = arith.constant 0 : index
    %130 = vector.load %arg15[%c0_56, %c0_57] : memref<32x32xf32, #tpu.memory_space<vmem>>, vector<32x32xf32>
    %cst_58 = arith.constant dense<0.000000e+00> : vector<16x32xf32>
    %131 = tpu.matmul %126, %130, %cst_58 {dimension_numbers = #tpu.dot_dimension_numbers<[1], [0], [0], [1], [0, 0, 1, 1], [], []>} : vector<16x32xf32>, vector<32x32xf32>, vector<16x32xf32> -> vector<16x32xf32>
    %132 = arith.addf %129, %131 : vector<16x32xf32>
    %c0_59 = arith.constant 0 : index
    %c0_60 = arith.constant 0 : index
    %133 = vector.load %arg16[%c0_59, %c0_60] : memref<1x32xf32, #tpu.memory_space<vmem>>, vector<1x32xf32>
    %134 = vector.broadcast %133 : vector<1x32xf32> to vector<16x32xf32>
    %135 = arith.addf %132, %134 : vector<16x32xf32>
    %cst_61 = arith.constant 0.000000e+00 : f32
    %136 = vector.broadcast %cst_61 : f32 to vector<16x32xf32>
    %137 = arith.maximumf %135, %136 : vector<16x32xf32>
    %c0_62 = arith.constant 0 : index
    %c0_63 = arith.constant 0 : index
    %138 = vector.load %arg17[%c0_62, %c0_63] : memref<32x4xf32, #tpu.memory_space<vmem>>, vector<32x4xf32>
    %cst_64 = arith.constant dense<0.000000e+00> : vector<16x4xf32>
    %139 = tpu.matmul %137, %138, %cst_64 {dimension_numbers = #tpu.dot_dimension_numbers<[1], [0], [0], [1], [0, 0, 1, 1], [], []>} : vector<16x32xf32>, vector<32x4xf32>, vector<16x4xf32> -> vector<16x4xf32>
    %c0_65 = arith.constant 0 : index
    %c0_66 = arith.constant 0 : index
    %140 = vector.load %arg18[%c0_65, %c0_66] : memref<1x4xf32, #tpu.memory_space<vmem>>, vector<1x4xf32>
    %141 = vector.broadcast %140 : vector<1x4xf32> to vector<16x4xf32>
    %142 = arith.addf %139, %141 : vector<16x4xf32>
    %143 = vector.shape_cast %142 : vector<16x4xf32> to vector<2x8x4xf32>
    %c0_67 = arith.constant 0 : index
    %c0_68 = arith.constant 0 : index
    %c0_69 = arith.constant 0 : index
    %144 = vector.load %arg19[%c0_67, %c0_68, %c0_69] : memref<2x8x4xf32, #tpu.memory_space<vmem>>, vector<2x8x4xf32>
    tpu.vector_store %arg19[%c0_67, %c0_68, %c0_69], %143 {strides = array<i32>} : memref<2x8x4xf32, #tpu.memory_space<vmem>>, vector<2x8x4xf32>,
    return
  }
}

</mosaic_0001>

<llo_original>
// kernel: gcnetwork_forward.1
$region0: #{gcnetwork_forward.1}
  #allocation0 [shape = 'u32[]', space=smem, size = 0x4, offset = 0x4, fixed_abs, tag = 'smem constant byte address 0x4 - core index']
  #allocation1 [shape = 'u32[144,128]{1,0:T(1,128)}', space=vmem, size = 0x12000, scoped, tag = 'internal scratch']
  %s0 = inlined_call_operand.vmem [shape: f32[2,8,4], index: 0, kind: input, shape index: {}]
  %s1 = inlined_call_operand.hbm [shape: f32[2,8,8], index: 1, kind: input, shape index: {}]
  %s2 = inlined_call_operand.hbm [shape: f32[4,64], index: 2, kind: input, shape index: {}]
  %s3 = inlined_call_operand.hbm [shape: f32[1,64], index: 3, kind: input, shape index: {}]
  %s4 = inlined_call_operand.hbm [shape: f32[1,32], index: 4, kind: input, shape index: {}]
  %s5 = inlined_call_operand.hbm [shape: f32[1,32], index: 5, kind: input, shape index: {}]
  %s6 = inlined_call_operand.vmem [shape: f32[32,64], index: 6, kind: input, shape index: {}]
  %s7 = inlined_call_operand.hbm [shape: f32[1,64], index: 7, kind: input, shape index: {}]
  %s8 = inlined_call_operand.vmem [shape: f32[1,32], index: 8, kind: input, shape index: {}]
  %s9 = inlined_call_operand.hbm [shape: f32[1,32], index: 9, kind: input, shape index: {}]
  %s10 = inlined_call_operand.vmem [shape: f32[32,64], index: 10, kind: input, shape index: {}]
  %s11 = inlined_call_operand.vmem [shape: f32[1,64], index: 11, kind: input, shape index: {}]
  %s12 = inlined_call_operand.vmem [shape: f32[1,32], index: 12, kind: input, shape index: {}]
  %s13 = inlined_call_operand.vmem [shape: f32[1,32], index: 13, kind: input, shape index: {}]
  %s14 = inlined_call_operand.vmem [shape: f32[4,32], index: 14, kind: input, shape index: {}]
  %s15 = inlined_call_operand.hbm [shape: f32[32,32], index: 15, kind: input, shape index: {}]
  %s16 = inlined_call_operand.vmem [shape: f32[1,32], index: 16, kind: input, shape index: {}]
  %s17 = inlined_call_operand.vmem [shape: f32[32,4], index: 17, kind: input, shape index: {}]
  %s18 = inlined_call_operand.vmem [shape: f32[1,4], index: 18, kind: input, shape index: {}]
  %s19 = inlined_call_operand.vmem [shape: f32[2,8,4], index: 19, kind: output, shape index: {}]
  %s20 = sld [smem:[#allocation0]]
  $region118: #{gcnetwork_forward.1} parent=0
    _
  %s22 = ssub.s32 1, %s20
  %s23 = scalar_select 0, %s22, %s20
  $region1: #{gcnetwork_forward.1} parent=0
    #allocation2 [shape = 'u8[8192]{0}', space=vmem, size = 0x2000, scoped, tag = 'input window, operand 1, single buffered']
    #allocation3 [shape = 's32[1]{0}', space=sflag, size = 0x4, scoped, tag = 'scoped memory for gcnetwork_forward.1']
    #allocation4 [shape = 'u8[2048]{0}', space=vmem, size = 0x800, scoped, tag = 'input window, operand 2, single buffered']
    #allocation5 [shape = 's32[1]{0}', space=sflag, size = 0x4, scoped, tag = 'scoped memory for gcnetwork_forward.1']
    #allocation6 [shape = 'u8[512]{0}', space=vmem, size = 0x400, scoped, tag = 'input window, operand 3, single buffered']
    #allocation7 [shape = 'u8[512]{0}', space=vmem, size = 0x400, scoped, tag = 'input window, operand 4, single buffered']
    #allocation8 [shape = 's32[1]{0}', space=sflag, size = 0x4, scoped, tag = 'scoped memory for gcnetwork_forward.1']
    #allocation9 [shape = 'u8[512]{0}', space=vmem, size = 0x400, scoped, tag = 'input window, operand 5, single buffered']
    #allocation10 [shape = 'u8[512]{0}', space=vmem, size = 0x400, scoped, tag = 'input window, operand 7, single buffered']
    #allocation11 [shape = 's32[1]{0}', space=sflag, size = 0x4, scoped, tag = 'scoped memory for gcnetwork_forward.1']
    #allocation12 [shape = 'u8[512]{0}', space=vmem, size = 0x400, scoped, tag = 'input window, operand 9, single buffered']
    #allocation13 [shape = 'u8[16384]{0}', space=vmem, size = 0x4000, scoped, tag = 'input window, operand 15, single buffered']
    #allocation14 [shape = 's32[1]{0}', space=sflag, size = 0x4, scoped, tag = 'scoped memory for gcnetwork_forward.1']
    %24 = vsyncpa [#allocation3], 0
    %25 = vsyncpa [#allocation5], 0
    %26 = vsyncpa [#allocation8], 0
    %27 = vsyncpa [#allocation11], 0
    %28 = vsyncpa [#allocation14], 0
    // Predicated region
    $region2: #{gcnetwork_forward.1} parent=1 // pred_check
      _
    $region3: #{gcnetwork_forward.1} parent=1 // pred_check_branch
      %30 = sbr.rel (0) target = $region5
    $region4: #{gcnetwork_forward.1} parent=1 // pred_region
      _
    $region5: #{gcnetwork_forward.1} parent=1 // pred_fallthru
      _
    // Predicated region
    $region6: #{gcnetwork_forward.1} parent=1 // pred_check
      _
    $region7: #{gcnetwork_forward.1} parent=1 // pred_check_branch
      %32 = sbr.rel (0) target = $region9
    $region8: #{gcnetwork_forward.1} parent=1 // pred_region
      %s34 = ssub.s32 256, 256
      %35 = vsyncadd [#allocation3], %s34
      %s36 = sshll.u32 [#allocation2], 4
      %s37 = int_to_ptr.vmem [resolvable:$true] %s36
      %42 = dma.hbm_to_vmem [thread:$0]  %s1, 256, %s37, [#allocation3], 128, 128, 8
    $region9: #{gcnetwork_forward.1} parent=1 // pred_fallthru
      _
    // Predicated region
    $region10: #{gcnetwork_forward.1} parent=1 // pred_check
      _
    $region11: #{gcnetwork_forward.1} parent=1 // pred_check_branch
      %44 = sbr.rel (0) target = $region13
    $region12: #{gcnetwork_forward.1} parent=1 // pred_region
      %s46 = ssub.s32 64, 64
      %47 = vsyncadd [#allocation5], %s46
      %s49 = sshll.u32 [#allocation4], 4
      %s50 = int_to_ptr.vmem [resolvable:$true] %s49
      %52 = dma.hbm_to_vmem [thread:$0]  %s2, 64, %s50, [#allocation5]
    $region13: #{gcnetwork_forward.1} parent=1 // pred_fallthru
      _
    // Predicated region
    $region14: #{gcnetwork_forward.1} parent=1 // pred_check
      _
    $region15: #{gcnetwork_forward.1} parent=1 // pred_check_branch
      %54 = sbr.rel (0) target = $region17
    $region16: #{gcnetwork_forward.1} parent=1 // pred_region
      %s56 = ssub.s32 16, 16
      %57 = vsyncadd [#allocation5], %s56
      %s59 = sshll.u32 [#allocation6], 4
      %s60 = int_to_ptr.vmem [resolvable:$true] %s59
      %62 = dma.hbm_to_vmem [thread:$0]  %s3, 16, %s60, [#allocation5]
    $region17: #{gcnetwork_forward.1} parent=1 // pred_fallthru
      _
    // Predicated region
    $region18: #{gcnetwork_forward.1} parent=1 // pred_check
      _
    $region19: #{gcnetwork_forward.1} parent=1 // pred_check_branch
      %64 = sbr.rel (0) target = $region21
    $region20: #{gcnetwork_forward.1} parent=1 // pred_region
      %s66 = ssub.s32 16, 16
      %67 = vsyncadd [#allocation8], %s66
      %s69 = sshll.u32 [#allocation7], 4
      %s70 = int_to_ptr.vmem [resolvable:$true] %s69
      %72 = dma.hbm_to_vmem [thread:$0]  %s4, 16, %s70, [#allocation8]
    $region21: #{gcnetwork_forward.1} parent=1 // pred_fallthru
      _
    // Predicated region
    $region22: #{gcnetwork_forward.1} parent=1 // pred_check
      _
    $region23: #{gcnetwork_forward.1} parent=1 // pred_check_branch
      %74 = sbr.rel (0) target = $region25
    $region24: #{gcnetwork_forward.1} parent=1 // pred_region
      %s76 = ssub.s32 16, 16
      %77 = vsyncadd [#allocation8], %s76
      %s79 = sshll.u32 [#allocation9], 4
      %s80 = int_to_ptr.vmem [resolvable:$true] %s79
      %82 = dma.hbm_to_vmem [thread:$0]  %s5, 16, %s80, [#allocation8]
    $region25: #{gcnetwork_forward.1} parent=1 // pred_fallthru
      _
    // Predicated region
    $region26: #{gcnetwork_forward.1} parent=1 // pred_check
      _
    $region27: #{gcnetwork_forward.1} parent=1 // pred_check_branch
      %84 = sbr.rel (0) target = $region29
    $region28: #{gcnetwork_forward.1} parent=1 // pred_region
      _
    $region29: #{gcnetwork_forward.1} parent=1 // pred_fallthru
      _
    // Predicated region
    $region30: #{gcnetwork_forward.1} parent=1 // pred_check
      _
    $region31: #{gcnetwork_forward.1} parent=1 // pred_check_branch
      %86 = sbr.rel (0) target = $region33
    $region32: #{gcnetwork_forward.1} parent=1 // pred_region
      %s88 = ssub.s32 16, 16
      %89 = vsyncadd [#allocation11], %s88
      %s91 = sshll.u32 [#allocation10], 4
      %s92 = int_to_ptr.vmem [resolvable:$true] %s91
      %94 = dma.hbm_to_vmem [thread:$0]  %s7, 16, %s92, [#allocation11]
    $region33: #{gcnetwork_forward.1} parent=1 // pred_fallthru
      _
    // Predicated region
    $region34: #{gcnetwork_forward.1} parent=1 // pred_check
      _
    $region35: #{gcnetwork_forward.1} parent=1 // pred_check_branch
      %96 = sbr.rel (0) target = $region37
    $region36: #{gcnetwork_forward.1} parent=1 // pred_region
      _
    $region37: #{gcnetwork_forward.1} parent=1 // pred_fallthru
      _
    // Predicated region
    $region38: #{gcnetwork_forward.1} parent=1 // pred_check
      _
    $region39: #{gcnetwork_forward.1} parent=1 // pred_check_branch
      %98 = sbr.rel (0) target = $region41
    $region40: #{gcnetwork_forward.1} parent=1 // pred_region
      %s100 = ssub.s32 16, 16
      %101 = vsyncadd [#allocation11], %s100
      %s103 = sshll.u32 [#allocation12], 4
      %s104 = int_to_ptr.vmem [resolvable:$true] %s103
      %106 = dma.hbm_to_vmem [thread:$0]  %s9, 16, %s104, [#allocation11]
    $region41: #{gcnetwork_forward.1} parent=1 // pred_fallthru
      _
    // Predicated region
    $region42: #{gcnetwork_forward.1} parent=1 // pred_check
      _
    $region43: #{gcnetwork_forward.1} parent=1 // pred_check_branch
      %108 = sbr.rel (0) target = $region45
    $region44: #{gcnetwork_forward.1} parent=1 // pred_region
      _
    $region45: #{gcnetwork_forward.1} parent=1 // pred_fallthru
      _
    // Predicated region
    $region46: #{gcnetwork_forward.1} parent=1 // pred_check
      _
    $region47: #{gcnetwork_forward.1} parent=1 // pred_check_branch
      %110 = sbr.rel (0) target = $region49
    $region48: #{gcnetwork_forward.1} parent=1 // pred_region
      _
    $region49: #{gcnetwork_forward.1} parent=1 // pred_fallthru
      _
    // Predicated region
    $region50: #{gcnetwork_forward.1} parent=1 // pred_check
      _
    $region51: #{gcnetwork_forward.1} parent=1 // pred_check_branch
      %112 = sbr.rel (0) target = $region53
    $region52: #{gcnetwork_forward.1} parent=1 // pred_region
      _
    $region53: #{gcnetwork_forward.1} parent=1 // pred_fallthru
      _
    // Predicated region
    $region54: #{gcnetwork_forward.1} parent=1 // pred_check
      _
    $region55: #{gcnetwork_forward.1} parent=1 // pred_check_branch
      %114 = sbr.rel (0) target = $region57
    $region56: #{gcnetwork_forward.1} parent=1 // pred_region
      _
    $region57: #{gcnetwork_forward.1} parent=1 // pred_fallthru
      _
    // Predicated region
    $region58: #{gcnetwork_forward.1} parent=1 // pred_check
      _
    $region59: #{gcnetwork_forward.1} parent=1 // pred_check_branch
      %116 = sbr.rel (0) target = $region61
    $region60: #{gcnetwork_forward.1} parent=1 // pred_region
      _
    $region61: #{gcnetwork_forward.1} parent=1 // pred_fallthru
      _
    // Predicated region
    $region62: #{gcnetwork_forward.1} parent=1 // pred_check
      _
    $region63: #{gcnetwork_forward.1} parent=1 // pred_check_branch
      %118 = sbr.rel (0) target = $region65
    $region64: #{gcnetwork_forward.1} parent=1 // pred_region
      %s120 = ssub.s32 512, 512
      %121 = vsyncadd [#allocation14], %s120
      %s122 = sshll.u32 [#allocation13], 4
      %s123 = int_to_ptr.vmem [resolvable:$true] %s122
      %128 = dma.hbm_to_vmem [thread:$0]  %s15, 512, %s123, [#allocation14], 128, 128, 8
    $region65: #{gcnetwork_forward.1} parent=1 // pred_fallthru
      _
    // Predicated region
    $region66: #{gcnetwork_forward.1} parent=1 // pred_check
      _
    $region67: #{gcnetwork_forward.1} parent=1 // pred_check_branch
      %130 = sbr.rel (0) target = $region69
    $region68: #{gcnetwork_forward.1} parent=1 // pred_region
      _
    $region69: #{gcnetwork_forward.1} parent=1 // pred_fallthru
      _
    // Predicated region
    $region70: #{gcnetwork_forward.1} parent=1 // pred_check
      _
    $region71: #{gcnetwork_forward.1} parent=1 // pred_check_branch
      %132 = sbr.rel (0) target = $region73
    $region72: #{gcnetwork_forward.1} parent=1 // pred_region
      _
    $region73: #{gcnetwork_forward.1} parent=1 // pred_fallthru
      _
    // Predicated region
    $region74: #{gcnetwork_forward.1} parent=1 // pred_check
      _
    $region75: #{gcnetwork_forward.1} parent=1 // pred_check_branch
      %134 = sbr.rel (0) target = $region77
    $region76: #{gcnetwork_forward.1} parent=1 // pred_region
      _
    $region77: #{gcnetwork_forward.1} parent=1 // pred_fallthru
      _
    // Predicated region
    $region78: #{gcnetwork_forward.1} parent=1 // pred_check
      _
    $region79: #{gcnetwork_forward.1} parent=1 // pred_check_branch
      %136 = sbr.rel (0) target = $region81
    $region80: #{gcnetwork_forward.1} parent=1 // pred_region
      %137 = dma.done [#allocation3], 256
    $region81: #{gcnetwork_forward.1} parent=1 // pred_fallthru
      _
    // Predicated region
    $region82: #{gcnetwork_forward.1} parent=1 // pred_check
      _
    $region83: #{gcnetwork_forward.1} parent=1 // pred_check_branch
      %139 = sbr.rel (0) target = $region85
    $region84: #{gcnetwork_forward.1} parent=1 // pred_region
      %140 = dma.done [#allocation5], 64
    $region85: #{gcnetwork_forward.1} parent=1 // pred_fallthru
      _
    // Predicated region
    $region86: #{gcnetwork_forward.1} parent=1 // pred_check
      _
    $region87: #{gcnetwork_forward.1} parent=1 // pred_check_branch
      %142 = sbr.rel (0) target = $region89
    $region88: #{gcnetwork_forward.1} parent=1 // pred_region
      %143 = dma.done [#allocation5], 16
    $region89: #{gcnetwork_forward.1} parent=1 // pred_fallthru
      _
    // Predicated region
    $region90: #{gcnetwork_forward.1} parent=1 // pred_check
      _
    $region91: #{gcnetwork_forward.1} parent=1 // pred_check_branch
      %145 = sbr.rel (0) target = $region93
    $region92: #{gcnetwork_forward.1} parent=1 // pred_region
      %146 = dma.done [#allocation8], 16
    $region93: #{gcnetwork_forward.1} parent=1 // pred_fallthru
      _
    // Predicated region
    $region94: #{gcnetwork_forward.1} parent=1 // pred_check
      _
    $region95: #{gcnetwork_forward.1} parent=1 // pred_check_branch
      %148 = sbr.rel (0) target = $region97
    $region96: #{gcnetwork_forward.1} parent=1 // pred_region
      %149 = dma.done [#allocation8], 16
    $region97: #{gcnetwork_forward.1} parent=1 // pred_fallthru
      _
    // Predicated region
    $region98: #{gcnetwork_forward.1} parent=1 // pred_check
      _
    $region99: #{gcnetwork_forward.1} parent=1 // pred_check_branch
      %151 = sbr.rel (0) target = $region101
    $region100: #{gcnetwork_forward.1} parent=1 // pred_region
      %152 = dma.done [#allocation11], 16
    $region101: #{gcnetwork_forward.1} parent=1 // pred_fallthru
      _
    // Predicated region
    $region102: #{gcnetwork_forward.1} parent=1 // pred_check
      _
    $region103: #{gcnetwork_forward.1} parent=1 // pred_check_branch
      %154 = sbr.rel (0) target = $region105
    $region104: #{gcnetwork_forward.1} parent=1 // pred_region
      %155 = dma.done [#allocation11], 16
    $region105: #{gcnetwork_forward.1} parent=1 // pred_fallthru
      _
    // Predicated region
    $region106: #{gcnetwork_forward.1} parent=1 // pred_check
      _
    $region107: #{gcnetwork_forward.1} parent=1 // pred_check_branch
      %157 = sbr.rel (0) target = $region109
    $region108: #{gcnetwork_forward.1} parent=1 // pred_region
      %158 = dma.done [#allocation14], 512
    $region109: #{gcnetwork_forward.1} parent=1 // pred_fallthru
      _
    %v159 = vld [vmem:[%s0] sm:$0xff]
    %v160 = vld [vmem:[%s0 + $0x8] sm:$0xff]
    %v161 = vld [vmem:[#allocation2] sm:$0xff]
    %v162 = vld [vmem:[#allocation2 + $0x8] sm:$0xff]
    %vm163 = vcmask 64512
    %v164 = vsel %vm163, %v161, 0.0
    %165 = vadd.xlane.f32.xlu0 %v164
    %v166 = vpop.xlane.xlu0 %165
    %v167 = vsel %vm163, %v162, 0.0
    %168 = vadd.xlane.f32.xlu0 %v167
    %v169 = vpop.xlane.xlu0 %168
    %v170 = vadd.f32 %v166, 1e-08
    %v171 = vadd.f32 %v169, 1e-08
    %v172 = vrcp.pop %v170
    %v173 = vmul.f32 %v161, %v172
    %v174 = vrcp.pop %v171
    %v175 = vmul.f32 %v162, %v174
    %v176 = vld [vmem:[#allocation4] sm:$0xf]
    %v177 = vld [vmem:[#allocation6] sm:$0x1]
    %v178 = vld [vmem:[#allocation7] sm:$0x1]
    %v179 = vld [vmem:[#allocation9] sm:$0x1]
    %v181 = vlaneseq
    %v182 = vshrl.u32 %v181, 7
    %v183 = vsub.s32 0, %v182
    %v184 = vrot.slane %v177, %v183
    %vm186 = vcmask 31744
    %v188 = vsel %vm186, %v159, 0
    %v191 = vsel %vm186, %v160, 0
    %vm193 = vcmask 1043456
    %v195 = vsel %vm193, %v176, 0
    %197 = vmatprep.subr.mxu0 0.0
    %198 = vmatpush1.msra.mxu0 0.0
    %199 = vmatprep.subr.mxu0 0.0
    %200 = vmatpush1.msra.mxu0 0.0
    %201 = vmatprep.subr.mxu0 0.0
    %202 = vmatpush1.msra.mxu0 0.0
    %203 = vmatprep.subr.mxu0 0.0
    %204 = vmatpush1.msra.mxu0 0.0
    %205 = vmatprep.subr.mxu0 0.0
    %206 = vmatpush1.msra.mxu0 0.0
    %207 = vmatprep.subr.mxu0 0.0
    %208 = vmatpush1.msra.mxu0 0.0
    %209 = vmatprep.subr.mxu0 0.0
    %210 = vmatpush1.msra.mxu0 0.0
    %211 = vmatprep.subr.mxu0 0.0
    %212 = vmatpush1.msra.mxu0 0.0
    %213 = vmatprep.subr.mxu0 0.0
    %214 = vmatpush1.msra.mxu0 0.0
    %215 = vmatprep.subr.mxu0 0.0
    %216 = vmatpush1.msra.mxu0 0.0
    %217 = vmatprep.subr.mxu0 0.0
    %218 = vmatpush1.msra.mxu0 0.0
    %219 = vmatprep.subr.mxu0 0.0
    %220 = vmatpush1.msra.mxu0 0.0
    %221 = vmatprep.subr.mxu0 0.0
    %222 = vmatpush1.msra.mxu0 0.0
    %223 = vmatprep.subr.mxu0 0.0
    %224 = vmatpush1.msra.mxu0 0.0
    %225 = vmatprep.subr.mxu0 0.0
    %226 = vmatpush1.msra.mxu0 0.0
    %227 = vmatprep.subr.mxu0 0.0
    %228 = vmatpush1.msra.mxu0 %v195
    %229 = vmatprep.subr.mxu0 0.0
    %230 = vmatpush2.msra.mxu0 0.0
    %231 = vmatprep.subr.mxu0 0.0
    %232 = vmatpush2.msra.mxu0 0.0
    %233 = vmatprep.subr.mxu0 0.0
    %234 = vmatpush2.msra.mxu0 0.0
    %235 = vmatprep.subr.mxu0 0.0
    %236 = vmatpush2.msra.mxu0 0.0
    %237 = vmatprep.subr.mxu0 0.0
    %238 = vmatpush2.msra.mxu0 0.0
    %239 = vmatprep.subr.mxu0 0.0
    %240 = vmatpush2.msra.mxu0 0.0
    %241 = vmatprep.subr.mxu0 0.0
    %242 = vmatpush2.msra.mxu0 0.0
    %243 = vmatprep.subr.mxu0 0.0
    %244 = vmatpush2.msra.mxu0 0.0
    %245 = vmatprep.subr.mxu0 0.0
    %246 = vmatpush2.msra.mxu0 0.0
    %247 = vmatprep.subr.mxu0 0.0
    %248 = vmatpush2.msra.mxu0 0.0
    %249 = vmatprep.subr.mxu0 0.0
    %250 = vmatpush2.msra.mxu0 0.0
    %251 = vmatprep.subr.mxu0 0.0
    %252 = vmatpush2.msra.mxu0 0.0
    %253 = vmatprep.subr.mxu0 0.0
    %254 = vmatpush2.msra.mxu0 0.0
    %255 = vmatprep.subr.mxu0 0.0
    %256 = vmatpush2.msra.mxu0 0.0
    %257 = vmatprep.subr.mxu0 0.0
    %258 = vmatpush2.msra.mxu0 0.0
    %259 = vmatprep.subr.mxu0 0.0
    %260 = vmatpush2.msra.mxu0 0.0
    %261 = vmatprep.mubr.f32.mxu0 0.0
    %262 = vmatmul.mubr.f32.gmra.mxu0 %v188
    %v263 = vpop.f32.mrf.mxu0
    %v264 = vadd.f32 %v184, %v263
    %v265 = vpop.f32.mrf.mxu0
    %266 = vmatprep.mubr.f32.mxu0 0.0
    %267 = vmatmul.mubr.f32.gmra.mxu0 %v191
    %v268 = vpop.f32.mrf.mxu0
    %v269 = vadd.f32 %v184, %v268
    %v270 = vpop.f32.mrf.mxu0
    %271 = vdwg.mxu0
    %273 = vrot.lane.b32.xlu0 %v264, 96
    %v274 = vpop.permute.xlu0 %273
    %v277 = vsel %vm163, %v173, 0
    %279 = vmatprep.subr.mxu0 0.0
    %280 = vmatpush1.msra.mxu0 0.0
    %281 = vmatprep.subr.mxu0 0.0
    %282 = vmatpush1.msra.mxu0 0.0
    %283 = vmatprep.subr.mxu0 0.0
    %284 = vmatpush1.msra.mxu0 0.0
    %285 = vmatprep.subr.mxu0 0.0
    %286 = vmatpush1.msra.mxu0 0.0
    %287 = vmatprep.subr.mxu0 0.0
    %288 = vmatpush1.msra.mxu0 0.0
    %289 = vmatprep.subr.mxu0 0.0
    %290 = vmatpush1.msra.mxu0 0.0
    %291 = vmatprep.subr.mxu0 0.0
    %292 = vmatpush1.msra.mxu0 0.0
    %293 = vmatprep.subr.mxu0 0.0
    %294 = vmatpush1.msra.mxu0 0.0
    %295 = vmatprep.subr.mxu0 0.0
    %296 = vmatpush1.msra.mxu0 0.0
    %297 = vmatprep.subr.mxu0 0.0
    %298 = vmatpush1.msra.mxu0 0.0
    %299 = vmatprep.subr.mxu0 0.0
    %300 = vmatpush1.msra.mxu0 0.0
    %301 = vmatprep.subr.mxu0 0.0
    %302 = vmatpush1.msra.mxu0 0.0
    %303 = vmatprep.subr.mxu0 0.0
    %304 = vmatpush1.msra.mxu0 0.0
    %305 = vmatprep.subr.mxu0 0.0
    %306 = vmatpush1.msra.mxu0 0.0
    %307 = vmatprep.subr.mxu0 0.0
    %308 = vmatpush1.msra.mxu0 0.0
    %309 = vmatprep.subr.mxu0 0.0
    %310 = vmatpush1.msra.mxu0 %v274
    %311 = vmatprep.subr.mxu0 0.0
    %312 = vmatpush2.msra.mxu0 0.0
    %313 = vmatprep.subr.mxu0 0.0
    %314 = vmatpush2.msra.mxu0 0.0
    %315 = vmatprep.subr.mxu0 0.0
    %316 = vmatpush2.msra.mxu0 0.0
    %317 = vmatprep.subr.mxu0 0.0
    %318 = vmatpush2.msra.mxu0 0.0
    %319 = vmatprep.subr.mxu0 0.0
    %320 = vmatpush2.msra.mxu0 0.0
    %321 = vmatprep.subr.mxu0 0.0
    %322 = vmatpush2.msra.mxu0 0.0
    %323 = vmatprep.subr.mxu0 0.0
    %324 = vmatpush2.msra.mxu0 0.0
    %325 = vmatprep.subr.mxu0 0.0
    %326 = vmatpush2.msra.mxu0 0.0
    %327 = vmatprep.subr.mxu0 0.0
    %328 = vmatpush2.msra.mxu0 0.0
    %329 = vmatprep.subr.mxu0 0.0
    %330 = vmatpush2.msra.mxu0 0.0
    %331 = vmatprep.subr.mxu0 0.0
    %332 = vmatpush2.msra.mxu0 0.0
    %333 = vmatprep.subr.mxu0 0.0
    %334 = vmatpush2.msra.mxu0 0.0
    %335 = vmatprep.subr.mxu0 0.0
    %336 = vmatpush2.msra.mxu0 0.0
    %337 = vmatprep.subr.mxu0 0.0
    %338 = vmatpush2.msra.mxu0 0.0
    %339 = vmatprep.subr.mxu0 0.0
    %340 = vmatpush2.msra.mxu0 0.0
    %341 = vmatprep.subr.mxu0 0.0
    %342 = vmatpush2.msra.mxu0 0.0
    %343 = vmatprep.mubr.f32.mxu0 0.0
    %344 = vmatmul.mubr.f32.gmra.mxu0 %v277
    %v345 = vpop.f32.mrf.mxu0
    %v346 = vadd.f32 0.0, %v345
    %v347 = vpop.f32.mrf.mxu0
    %348 = vdwg.mxu0
    %350 = vrot.lane.b32.xlu0 %v269, 96
    %v351 = vpop.permute.xlu0 %350
    %v354 = vsel %vm163, %v175, 0
    %356 = vmatprep.subr.mxu0 0.0
    %357 = vmatpush1.msra.mxu0 0.0
    %358 = vmatprep.subr.mxu0 0.0
    %359 = vmatpush1.msra.mxu0 0.0
    %360 = vmatprep.subr.mxu0 0.0
    %361 = vmatpush1.msra.mxu0 0.0
    %362 = vmatprep.subr.mxu0 0.0
    %363 = vmatpush1.msra.mxu0 0.0
    %364 = vmatprep.subr.mxu0 0.0
    %365 = vmatpush1.msra.mxu0 0.0
    %366 = vmatprep.subr.mxu0 0.0
    %367 = vmatpush1.msra.mxu0 0.0
    %368 = vmatprep.subr.mxu0 0.0
    %369 = vmatpush1.msra.mxu0 0.0
    %370 = vmatprep.subr.mxu0 0.0
    %371 = vmatpush1.msra.mxu0 0.0
    %372 = vmatprep.subr.mxu0 0.0
    %373 = vmatpush1.msra.mxu0 0.0
    %374 = vmatprep.subr.mxu0 0.0
    %375 = vmatpush1.msra.mxu0 0.0
    %376 = vmatprep.subr.mxu0 0.0
    %377 = vmatpush1.msra.mxu0 0.0
    %378 = vmatprep.subr.mxu0 0.0
    %379 = vmatpush1.msra.mxu0 0.0
    %380 = vmatprep.subr.mxu0 0.0
    %381 = vmatpush1.msra.mxu0 0.0
    %382 = vmatprep.subr.mxu0 0.0
    %383 = vmatpush1.msra.mxu0 0.0
    %384 = vmatprep.subr.mxu0 0.0
    %385 = vmatpush1.msra.mxu0 0.0
    %386 = vmatprep.subr.mxu0 0.0
    %387 = vmatpush1.msra.mxu0 %v351
    %388 = vmatprep.subr.mxu0 0.0
    %389 = vmatpush2.msra.mxu0 0.0
    %390 = vmatprep.subr.mxu0 0.0
    %391 = vmatpush2.msra.mxu0 0.0
    %392 = vmatprep.subr.mxu0 0.0
    %393 = vmatpush2.msra.mxu0 0.0
    %394 = vmatprep.subr.mxu0 0.0
    %395 = vmatpush2.msra.mxu0 0.0
    %396 = vmatprep.subr.mxu0 0.0
    %397 = vmatpush2.msra.mxu0 0.0
    %398 = vmatprep.subr.mxu0 0.0
    %399 = vmatpush2.msra.mxu0 0.0
    %400 = vmatprep.subr.mxu0 0.0
    %401 = vmatpush2.msra.mxu0 0.0
    %402 = vmatprep.subr.mxu0 0.0
    %403 = vmatpush2.msra.mxu0 0.0
    %404 = vmatprep.subr.mxu0 0.0
    %405 = vmatpush2.msra.mxu0 0.0
    %406 = vmatprep.subr.mxu0 0.0
    %407 = vmatpush2.msra.mxu0 0.0
    %408 = vmatprep.subr.mxu0 0.0
    %409 = vmatpush2.msra.mxu0 0.0
    %410 = vmatprep.subr.mxu0 0.0
    %411 = vmatpush2.msra.mxu0 0.0
    %412 = vmatprep.subr.mxu0 0.0
    %413 = vmatpush2.msra.mxu0 0.0
    %414 = vmatprep.subr.mxu0 0.0
    %415 = vmatpush2.msra.mxu0 0.0
    %416 = vmatprep.subr.mxu0 0.0
    %417 = vmatpush2.msra.mxu0 0.0
    %418 = vmatprep.subr.mxu0 0.0
    %419 = vmatpush2.msra.mxu0 0.0
    %420 = vmatprep.mubr.f32.mxu0 0.0
    %421 = vmatmul.mubr.f32.gmra.mxu0 %v354
    %v422 = vpop.f32.mrf.mxu0
    %v423 = vadd.f32 0.0, %v422
    %v424 = vpop.f32.mrf.mxu0
    %425 = vdwg.mxu0
    %v426 = vadd.f32 %v264, %v346
    %v427 = vadd.f32 %v269, %v423
    %vm428 = vcmask 261120
    %v429 = vsel %vm428, %v426, 0.0
    %430 = vadd.xlane.f32.xlu0 %v429
    %v431 = vpop.xlane.xlu0 %430
    %v432 = vsel %vm428, %v427, 0.0
    %433 = vadd.xlane.f32.xlu0 %v432
    %v434 = vpop.xlane.xlu0 %433
    %v435 = vrcp.pop 32.0
    %v436 = vmul.f32 %v431, %v435
    %v437 = vmul.f32 %v434, %v435
    %v438 = vsub.f32 %v426, %v436
    %v439 = vsub.f32 %v427, %v437
    %v440 = vmul.f32 %v438, %v438
    %v441 = vmul.f32 %v439, %v439
    %v442 = vsel %vm428, %v440, 0.0
    %443 = vadd.xlane.f32.xlu0 %v442
    %v444 = vpop.xlane.xlu0 %443
    %v445 = vsel %vm428, %v441, 0.0
    %446 = vadd.xlane.f32.xlu0 %v445
    %v447 = vpop.xlane.xlu0 %446
    %v448 = vmul.f32 %v444, %v435
    %v449 = vmul.f32 %v447, %v435
    %v450 = vadd.f32 %v448, 1e-05
    %v451 = vadd.f32 %v449, 1e-05
    %v452 = vrsqrt.pop %v450
    %v453 = vrsqrt.pop %v451
    %v454 = vmul.f32 %v438, %v452
    %v455 = vmul.f32 %v439, %v453
    %v457 = vlaneseq
    %v458 = vshrl.u32 %v457, 7
    %v459 = vsub.s32 0, %v458
    %v460 = vrot.slane %v178, %v459
    %v462 = vmul.f32 %v454, %v460
    %v463 = vmul.f32 %v455, %v460
    %v465 = vlaneseq
    %v466 = vshrl.u32 %v465, 7
    %v467 = vsub.s32 0, %v466
    %v468 = vrot.slane %v179, %v467
    %v470 = vadd.f32 %v462, %v468
    %v471 = vadd.f32 %v463, %v468
    %v472 = vmax.f32 %v470, 0.0
    %v473 = vmax.f32 %v471, 0.0
    %v474 = vld [vmem:[%s6] sm:$0xff]
    %v475 = vld [vmem:[%s6 + $0x8] sm:$0xff]
    %v476 = vld [vmem:[%s6 + $0x10] sm:$0xff]
    %v477 = vld [vmem:[%s6 + $0x18] sm:$0xff]
    %v478 = vld [vmem:[#allocation10] sm:$0x1]
    %v479 = vld [vmem:[%s8] sm:$0x1]
    %v480 = vld [vmem:[#allocation12] sm:$0x1]
    %v482 = vlaneseq
    %v483 = vshrl.u32 %v482, 7
    %v484 = vsub.s32 0, %v483
    %v485 = vrot.slane %v478, %v484
    %v488 = vsel %vm428, %v472, 0
    %v491 = vsel %vm428, %v473, 0
    %493 = vmatprep.subr.mxu0 0.0
    %494 = vmatpush1.msra.mxu0 0.0
    %495 = vmatprep.subr.mxu0 0.0
    %496 = vmatpush1.msra.mxu0 0.0
    %497 = vmatprep.subr.mxu0 0.0
    %498 = vmatpush1.msra.mxu0 0.0
    %499 = vmatprep.subr.mxu0 0.0
    %500 = vmatpush1.msra.mxu0 0.0
    %501 = vmatprep.subr.mxu0 0.0
    %502 = vmatpush1.msra.mxu0 0.0
    %503 = vmatprep.subr.mxu0 0.0
    %504 = vmatpush1.msra.mxu0 0.0
    %505 = vmatprep.subr.mxu0 0.0
    %506 = vmatpush1.msra.mxu0 0.0
    %507 = vmatprep.subr.mxu0 0.0
    %508 = vmatpush1.msra.mxu0 0.0
    %509 = vmatprep.subr.mxu0 0.0
    %510 = vmatpush1.msra.mxu0 0.0
    %511 = vmatprep.subr.mxu0 0.0
    %512 = vmatpush1.msra.mxu0 0.0
    %513 = vmatprep.subr.mxu0 0.0
    %514 = vmatpush1.msra.mxu0 0.0
    %515 = vmatprep.subr.mxu0 0.0
    %516 = vmatpush1.msra.mxu0 0.0
    %517 = vmatprep.subr.mxu0 0.0
    %518 = vmatpush1.msra.mxu0 %v477
    %519 = vmatprep.subr.mxu0 0.0
    %520 = vmatpush1.msra.mxu0 %v476
    %521 = vmatprep.subr.mxu0 0.0
    %522 = vmatpush1.msra.mxu0 %v475
    %523 = vmatprep.subr.mxu0 0.0
    %524 = vmatpush1.msra.mxu0 %v474
    %525 = vmatprep.subr.mxu0 0.0
    %526 = vmatpush2.msra.mxu0 0.0
    %527 = vmatprep.subr.mxu0 0.0
    %528 = vmatpush2.msra.mxu0 0.0
    %529 = vmatprep.subr.mxu0 0.0
    %530 = vmatpush2.msra.mxu0 0.0
    %531 = vmatprep.subr.mxu0 0.0
    %532 = vmatpush2.msra.mxu0 0.0
    %533 = vmatprep.subr.mxu0 0.0
    %534 = vmatpush2.msra.mxu0 0.0
    %535 = vmatprep.subr.mxu0 0.0
    %536 = vmatpush2.msra.mxu0 0.0
    %537 = vmatprep.subr.mxu0 0.0
    %538 = vmatpush2.msra.mxu0 0.0
    %539 = vmatprep.subr.mxu0 0.0
    %540 = vmatpush2.msra.mxu0 0.0
    %541 = vmatprep.subr.mxu0 0.0
    %542 = vmatpush2.msra.mxu0 0.0
    %543 = vmatprep.subr.mxu0 0.0
    %544 = vmatpush2.msra.mxu0 0.0
    %545 = vmatprep.subr.mxu0 0.0
    %546 = vmatpush2.msra.mxu0 0.0
    %547 = vmatprep.subr.mxu0 0.0
    %548 = vmatpush2.msra.mxu0 0.0
    %549 = vmatprep.subr.mxu0 0.0
    %550 = vmatpush2.msra.mxu0 0.0
    %551 = vmatprep.subr.mxu0 0.0
    %552 = vmatpush2.msra.mxu0 0.0
    %553 = vmatprep.subr.mxu0 0.0
    %554 = vmatpush2.msra.mxu0 0.0
    %555 = vmatprep.subr.mxu0 0.0
    %556 = vmatpush2.msra.mxu0 0.0
    %557 = vmatprep.mubr.f32.mxu0 0.0
    %558 = vmatmul.mubr.f32.gmra.mxu0 %v488
    %v559 = vpop.f32.mrf.mxu0
    %v560 = vadd.f32 %v485, %v559
    %v561 = vpop.f32.mrf.mxu0
    %562 = vmatprep.mubr.f32.mxu0 0.0
    %563 = vmatmul.mubr.f32.gmra.mxu0 %v491
    %v564 = vpop.f32.mrf.mxu0
    %v565 = vadd.f32 %v485, %v564
    %v566 = vpop.f32.mrf.mxu0
    %567 = vdwg.mxu0
    %569 = vrot.lane.b32.xlu0 %v560, 96
    %v570 = vpop.permute.xlu0 %569
    %572 = vmatprep.subr.mxu0 0.0
    %573 = vmatpush1.msra.mxu0 0.0
    %574 = vmatprep.subr.mxu0 0.0
    %575 = vmatpush1.msra.mxu0 0.0
    %576 = vmatprep.subr.mxu0 0.0
    %577 = vmatpush1.msra.mxu0 0.0
    %578 = vmatprep.subr.mxu0 0.0
    %579 = vmatpush1.msra.mxu0 0.0
    %580 = vmatprep.subr.mxu0 0.0
    %581 = vmatpush1.msra.mxu0 0.0
    %582 = vmatprep.subr.mxu0 0.0
    %583 = vmatpush1.msra.mxu0 0.0
    %584 = vmatprep.subr.mxu0 0.0
    %585 = vmatpush1.msra.mxu0 0.0
    %586 = vmatprep.subr.mxu0 0.0
    %587 = vmatpush1.msra.mxu0 0.0
    %588 = vmatprep.subr.mxu0 0.0
    %589 = vmatpush1.msra.mxu0 0.0
    %590 = vmatprep.subr.mxu0 0.0
    %591 = vmatpush1.msra.mxu0 0.0
    %592 = vmatprep.subr.mxu0 0.0
    %593 = vmatpush1.msra.mxu0 0.0
    %594 = vmatprep.subr.mxu0 0.0
    %595 = vmatpush1.msra.mxu0 0.0
    %596 = vmatprep.subr.mxu0 0.0
    %597 = vmatpush1.msra.mxu0 0.0
    %598 = vmatprep.subr.mxu0 0.0
    %599 = vmatpush1.msra.mxu0 0.0
    %600 = vmatprep.subr.mxu0 0.0
    %601 = vmatpush1.msra.mxu0 0.0
    %602 = vmatprep.subr.mxu0 0.0
    %603 = vmatpush1.msra.mxu0 %v570
    %604 = vmatprep.subr.mxu0 0.0
    %605 = vmatpush2.msra.mxu0 0.0
    %606 = vmatprep.subr.mxu0 0.0
    %607 = vmatpush2.msra.mxu0 0.0
    %608 = vmatprep.subr.mxu0 0.0
    %609 = vmatpush2.msra.mxu0 0.0
    %610 = vmatprep.subr.mxu0 0.0
    %611 = vmatpush2.msra.mxu0 0.0
    %612 = vmatprep.subr.mxu0 0.0
    %613 = vmatpush2.msra.mxu0 0.0
    %614 = vmatprep.subr.mxu0 0.0
    %615 = vmatpush2.msra.mxu0 0.0
    %616 = vmatprep.subr.mxu0 0.0
    %617 = vmatpush2.msra.mxu0 0.0
    %618 = vmatprep.subr.mxu0 0.0
    %619 = vmatpush2.msra.mxu0 0.0
    %620 = vmatprep.subr.mxu0 0.0
    %621 = vmatpush2.msra.mxu0 0.0
    %622 = vmatprep.subr.mxu0 0.0
    %623 = vmatpush2.msra.mxu0 0.0
    %624 = vmatprep.subr.mxu0 0.0
    %625 = vmatpush2.msra.mxu0 0.0
    %626 = vmatprep.subr.mxu0 0.0
    %627 = vmatpush2.msra.mxu0 0.0
    %628 = vmatprep.subr.mxu0 0.0
    %629 = vmatpush2.msra.mxu0 0.0
    %630 = vmatprep.subr.mxu0 0.0
    %631 = vmatpush2.msra.mxu0 0.0
    %632 = vmatprep.subr.mxu0 0.0
    %633 = vmatpush2.msra.mxu0 0.0
    %634 = vmatprep.subr.mxu0 0.0
    %635 = vmatpush2.msra.mxu0 0.0
    %636 = vmatprep.mubr.f32.mxu0 0.0
    %637 = vmatmul.mubr.f32.gmra.mxu0 %v277
    %v638 = vpop.f32.mrf.mxu0
    %v639 = vadd.f32 0.0, %v638
    %v640 = vpop.f32.mrf.mxu0
    %641 = vdwg.mxu0
    %643 = vrot.lane.b32.xlu0 %v565, 96
    %v644 = vpop.permute.xlu0 %643
    %646 = vmatprep.subr.mxu0 0.0
    %647 = vmatpush1.msra.mxu0 0.0
    %648 = vmatprep.subr.mxu0 0.0
    %649 = vmatpush1.msra.mxu0 0.0
    %650 = vmatprep.subr.mxu0 0.0
    %651 = vmatpush1.msra.mxu0 0.0
    %652 = vmatprep.subr.mxu0 0.0
    %653 = vmatpush1.msra.mxu0 0.0
    %654 = vmatprep.subr.mxu0 0.0
    %655 = vmatpush1.msra.mxu0 0.0
    %656 = vmatprep.subr.mxu0 0.0
    %657 = vmatpush1.msra.mxu0 0.0
    %658 = vmatprep.subr.mxu0 0.0
    %659 = vmatpush1.msra.mxu0 0.0
    %660 = vmatprep.subr.mxu0 0.0
    %661 = vmatpush1.msra.mxu0 0.0
    %662 = vmatprep.subr.mxu0 0.0
    %663 = vmatpush1.msra.mxu0 0.0
    %664 = vmatprep.subr.mxu0 0.0
    %665 = vmatpush1.msra.mxu0 0.0
    %666 = vmatprep.subr.mxu0 0.0
    %667 = vmatpush1.msra.mxu0 0.0
    %668 = vmatprep.subr.mxu0 0.0
    %669 = vmatpush1.msra.mxu0 0.0
    %670 = vmatprep.subr.mxu0 0.0
    %671 = vmatpush1.msra.mxu0 0.0
    %672 = vmatprep.subr.mxu0 0.0
    %673 = vmatpush1.msra.mxu0 0.0
    %674 = vmatprep.subr.mxu0 0.0
    %675 = vmatpush1.msra.mxu0 0.0
    %676 = vmatprep.subr.mxu0 0.0
    %677 = vmatpush1.msra.mxu0 %v644
    %678 = vmatprep.subr.mxu0 0.0
    %679 = vmatpush2.msra.mxu0 0.0
    %680 = vmatprep.subr.mxu0 0.0
    %681 = vmatpush2.msra.mxu0 0.0
    %682 = vmatprep.subr.mxu0 0.0
    %683 = vmatpush2.msra.mxu0 0.0
    %684 = vmatprep.subr.mxu0 0.0
    %685 = vmatpush2.msra.mxu0 0.0
    %686 = vmatprep.subr.mxu0 0.0
    %687 = vmatpush2.msra.mxu0 0.0
    %688 = vmatprep.subr.mxu0 0.0
    %689 = vmatpush2.msra.mxu0 0.0
    %690 = vmatprep.subr.mxu0 0.0
    %691 = vmatpush2.msra.mxu0 0.0
    %692 = vmatprep.subr.mxu0 0.0
    %693 = vmatpush2.msra.mxu0 0.0
    %694 = vmatprep.subr.mxu0 0.0
    %695 = vmatpush2.msra.mxu0 0.0
    %696 = vmatprep.subr.mxu0 0.0
    %697 = vmatpush2.msra.mxu0 0.0
    %698 = vmatprep.subr.mxu0 0.0
    %699 = vmatpush2.msra.mxu0 0.0
    %700 = vmatprep.subr.mxu0 0.0
    %701 = vmatpush2.msra.mxu0 0.0
    %702 = vmatprep.subr.mxu0 0.0
    %703 = vmatpush2.msra.mxu0 0.0
    %704 = vmatprep.subr.mxu0 0.0
    %705 = vmatpush2.msra.mxu0 0.0
    %706 = vmatprep.subr.mxu0 0.0
    %707 = vmatpush2.msra.mxu0 0.0
    %708 = vmatprep.subr.mxu0 0.0
    %709 = vmatpush2.msra.mxu0 0.0
    %710 = vmatprep.mubr.f32.mxu0 0.0
    %711 = vmatmul.mubr.f32.gmra.mxu0 %v354
    %v712 = vpop.f32.mrf.mxu0
    %v713 = vadd.f32 0.0, %v712
    %v714 = vpop.f32.mrf.mxu0
    %715 = vdwg.mxu0
    %v716 = vadd.f32 %v560, %v639
    %v717 = vadd.f32 %v565, %v713
    %v718 = vsel %vm428, %v716, 0.0
    %719 = vadd.xlane.f32.xlu0 %v718
    %v720 = vpop.xlane.xlu0 %719
    %v721 = vsel %vm428, %v717, 0.0
    %722 = vadd.xlane.f32.xlu0 %v721
    %v723 = vpop.xlane.xlu0 %722
    %v724 = vmul.f32 %v720, %v435
    %v725 = vmul.f32 %v723, %v435
    %v726 = vsub.f32 %v716, %v724
    %v727 = vsub.f32 %v717, %v725
    %v728 = vmul.f32 %v726, %v726
    %v729 = vmul.f32 %v727, %v727
    %v730 = vsel %vm428, %v728, 0.0
    %731 = vadd.xlane.f32.xlu0 %v730
    %v732 = vpop.xlane.xlu0 %731
    %v733 = vsel %vm428, %v729, 0.0
    %734 = vadd.xlane.f32.xlu0 %v733
    %v735 = vpop.xlane.xlu0 %734
    %v736 = vmul.f32 %v732, %v435
    %v737 = vmul.f32 %v735, %v435
    %v738 = vadd.f32 %v736, 1e-05
    %v739 = vadd.f32 %v737, 1e-05
    %v740 = vrsqrt.pop %v738
    %v741 = vrsqrt.pop %v739
    %v742 = vmul.f32 %v726, %v740
    %v743 = vmul.f32 %v727, %v741
    %v745 = vlaneseq
    %v746 = vshrl.u32 %v745, 7
    %v747 = vsub.s32 0, %v746
    %v748 = vrot.slane %v479, %v747
    %v750 = vmul.f32 %v742, %v748
    %v751 = vmul.f32 %v743, %v748
    %v753 = vlaneseq
    %v754 = vshrl.u32 %v753, 7
    %v755 = vsub.s32 0, %v754
    %v756 = vrot.slane %v480, %v755
    %v758 = vadd.f32 %v750, %v756
    %v759 = vadd.f32 %v751, %v756
    %v760 = vmax.f32 %v758, 0.0
    %v761 = vmax.f32 %v759, 0.0
    %v762 = vld [vmem:[%s10] sm:$0xff]
    %v763 = vld [vmem:[%s10 + $0x8] sm:$0xff]
    %v764 = vld [vmem:[%s10 + $0x10] sm:$0xff]
    %v765 = vld [vmem:[%s10 + $0x18] sm:$0xff]
    %v766 = vld [vmem:[%s11] sm:$0x1]
    %v767 = vld [vmem:[%s12] sm:$0x1]
    %v768 = vld [vmem:[%s13] sm:$0x1]
    %v770 = vlaneseq
    %v771 = vshrl.u32 %v770, 7
    %v772 = vsub.s32 0, %v771
    %v773 = vrot.slane %v766, %v772
    %v776 = vsel %vm428, %v760, 0
    %v779 = vsel %vm428, %v761, 0
    %781 = vmatprep.subr.mxu0 0.0
    %782 = vmatpush1.msra.mxu0 0.0
    %783 = vmatprep.subr.mxu0 0.0
    %784 = vmatpush1.msra.mxu0 0.0
    %785 = vmatprep.subr.mxu0 0.0
    %786 = vmatpush1.msra.mxu0 0.0
    %787 = vmatprep.subr.mxu0 0.0
    %788 = vmatpush1.msra.mxu0 0.0
    %789 = vmatprep.subr.mxu0 0.0
    %790 = vmatpush1.msra.mxu0 0.0
    %791 = vmatprep.subr.mxu0 0.0
    %792 = vmatpush1.msra.mxu0 0.0
    %793 = vmatprep.subr.mxu0 0.0
    %794 = vmatpush1.msra.mxu0 0.0
    %795 = vmatprep.subr.mxu0 0.0
    %796 = vmatpush1.msra.mxu0 0.0
    %797 = vmatprep.subr.mxu0 0.0
    %798 = vmatpush1.msra.mxu0 0.0
    %799 = vmatprep.subr.mxu0 0.0
    %800 = vmatpush1.msra.mxu0 0.0
    %801 = vmatprep.subr.mxu0 0.0
    %802 = vmatpush1.msra.mxu0 0.0
    %803 = vmatprep.subr.mxu0 0.0
    %804 = vmatpush1.msra.mxu0 0.0
    %805 = vmatprep.subr.mxu0 0.0
    %806 = vmatpush1.msra.mxu0 %v765
    %807 = vmatprep.subr.mxu0 0.0
    %808 = vmatpush1.msra.mxu0 %v764
    %809 = vmatprep.subr.mxu0 0.0
    %810 = vmatpush1.msra.mxu0 %v763
    %811 = vmatprep.subr.mxu0 0.0
    %812 = vmatpush1.msra.mxu0 %v762
    %813 = vmatprep.subr.mxu0 0.0
    %814 = vmatpush2.msra.mxu0 0.0
    %815 = vmatprep.subr.mxu0 0.0
    %816 = vmatpush2.msra.mxu0 0.0
    %817 = vmatprep.subr.mxu0 0.0
    %818 = vmatpush2.msra.mxu0 0.0
    %819 = vmatprep.subr.mxu0 0.0
    %820 = vmatpush2.msra.mxu0 0.0
    %821 = vmatprep.subr.mxu0 0.0
    %822 = vmatpush2.msra.mxu0 0.0
    %823 = vmatprep.subr.mxu0 0.0
    %824 = vmatpush2.msra.mxu0 0.0
    %825 = vmatprep.subr.mxu0 0.0
    %826 = vmatpush2.msra.mxu0 0.0
    %827 = vmatprep.subr.mxu0 0.0
    %828 = vmatpush2.msra.mxu0 0.0
    %829 = vmatprep.subr.mxu0 0.0
    %830 = vmatpush2.msra.mxu0 0.0
    %831 = vmatprep.subr.mxu0 0.0
    %832 = vmatpush2.msra.mxu0 0.0
    %833 = vmatprep.subr.mxu0 0.0
    %834 = vmatpush2.msra.mxu0 0.0
    %835 = vmatprep.subr.mxu0 0.0
    %836 = vmatpush2.msra.mxu0 0.0
    %837 = vmatprep.subr.mxu0 0.0
    %838 = vmatpush2.msra.mxu0 0.0
    %839 = vmatprep.subr.mxu0 0.0
    %840 = vmatpush2.msra.mxu0 0.0
    %841 = vmatprep.subr.mxu0 0.0
    %842 = vmatpush2.msra.mxu0 0.0
    %843 = vmatprep.subr.mxu0 0.0
    %844 = vmatpush2.msra.mxu0 0.0
    %845 = vmatprep.mubr.f32.mxu0 0.0
    %846 = vmatmul.mubr.f32.gmra.mxu0 %v776
    %v847 = vpop.f32.mrf.mxu0
    %v848 = vadd.f32 %v773, %v847
    %v849 = vpop.f32.mrf.mxu0
    %850 = vmatprep.mubr.f32.mxu0 0.0
    %851 = vmatmul.mubr.f32.gmra.mxu0 %v779
    %v852 = vpop.f32.mrf.mxu0
    %v853 = vadd.f32 %v773, %v852
    %v854 = vpop.f32.mrf.mxu0
    %855 = vdwg.mxu0
    %857 = vrot.lane.b32.xlu0 %v848, 96
    %v858 = vpop.permute.xlu0 %857
    %860 = vmatprep.subr.mxu0 0.0
    %861 = vmatpush1.msra.mxu0 0.0
    %862 = vmatprep.subr.mxu0 0.0
    %863 = vmatpush1.msra.mxu0 0.0
    %864 = vmatprep.subr.mxu0 0.0
    %865 = vmatpush1.msra.mxu0 0.0
    %866 = vmatprep.subr.mxu0 0.0
    %867 = vmatpush1.msra.mxu0 0.0
    %868 = vmatprep.subr.mxu0 0.0
    %869 = vmatpush1.msra.mxu0 0.0
    %870 = vmatprep.subr.mxu0 0.0
    %871 = vmatpush1.msra.mxu0 0.0
    %872 = vmatprep.subr.mxu0 0.0
    %873 = vmatpush1.msra.mxu0 0.0
    %874 = vmatprep.subr.mxu0 0.0
    %875 = vmatpush1.msra.mxu0 0.0
    %876 = vmatprep.subr.mxu0 0.0
    %877 = vmatpush1.msra.mxu0 0.0
    %878 = vmatprep.subr.mxu0 0.0
    %879 = vmatpush1.msra.mxu0 0.0
    %880 = vmatprep.subr.mxu0 0.0
    %881 = vmatpush1.msra.mxu0 0.0
    %882 = vmatprep.subr.mxu0 0.0
    %883 = vmatpush1.msra.mxu0 0.0
    %884 = vmatprep.subr.mxu0 0.0
    %885 = vmatpush1.msra.mxu0 0.0
    %886 = vmatprep.subr.mxu0 0.0
    %887 = vmatpush1.msra.mxu0 0.0
    %888 = vmatprep.subr.mxu0 0.0
    %889 = vmatpush1.msra.mxu0 0.0
    %890 = vmatprep.subr.mxu0 0.0
    %891 = vmatpush1.msra.mxu0 %v858
    %892 = vmatprep.subr.mxu0 0.0
    %893 = vmatpush2.msra.mxu0 0.0
    %894 = vmatprep.subr.mxu0 0.0
    %895 = vmatpush2.msra.mxu0 0.0
    %896 = vmatprep.subr.mxu0 0.0
    %897 = vmatpush2.msra.mxu0 0.0
    %898 = vmatprep.subr.mxu0 0.0
    %899 = vmatpush2.msra.mxu0 0.0
    %900 = vmatprep.subr.mxu0 0.0
    %901 = vmatpush2.msra.mxu0 0.0
    %902 = vmatprep.subr.mxu0 0.0
    %903 = vmatpush2.msra.mxu0 0.0
    %904 = vmatprep.subr.mxu0 0.0
    %905 = vmatpush2.msra.mxu0 0.0
    %906 = vmatprep.subr.mxu0 0.0
    %907 = vmatpush2.msra.mxu0 0.0
    %908 = vmatprep.subr.mxu0 0.0
    %909 = vmatpush2.msra.mxu0 0.0
    %910 = vmatprep.subr.mxu0 0.0
    %911 = vmatpush2.msra.mxu0 0.0
    %912 = vmatprep.subr.mxu0 0.0
    %913 = vmatpush2.msra.mxu0 0.0
    %914 = vmatprep.subr.mxu0 0.0
    %915 = vmatpush2.msra.mxu0 0.0
    %916 = vmatprep.subr.mxu0 0.0
    %917 = vmatpush2.msra.mxu0 0.0
    %918 = vmatprep.subr.mxu0 0.0
    %919 = vmatpush2.msra.mxu0 0.0
    %920 = vmatprep.subr.mxu0 0.0
    %921 = vmatpush2.msra.mxu0 0.0
    %922 = vmatprep.subr.mxu0 0.0
    %923 = vmatpush2.msra.mxu0 0.0
    %924 = vmatprep.mubr.f32.mxu0 0.0
    %925 = vmatmul.mubr.f32.gmra.mxu0 %v277
    %v926 = vpop.f32.mrf.mxu0
    %v927 = vadd.f32 0.0, %v926
    %v928 = vpop.f32.mrf.mxu0
    %929 = vdwg.mxu0
    %931 = vrot.lane.b32.xlu0 %v853, 96
    %v932 = vpop.permute.xlu0 %931
    %934 = vmatprep.subr.mxu0 0.0
    %935 = vmatpush1.msra.mxu0 0.0
    %936 = vmatprep.subr.mxu0 0.0
    %937 = vmatpush1.msra.mxu0 0.0
    %938 = vmatprep.subr.mxu0 0.0
    %939 = vmatpush1.msra.mxu0 0.0
    %940 = vmatprep.subr.mxu0 0.0
    %941 = vmatpush1.msra.mxu0 0.0
    %942 = vmatprep.subr.mxu0 0.0
    %943 = vmatpush1.msra.mxu0 0.0
    %944 = vmatprep.subr.mxu0 0.0
    %945 = vmatpush1.msra.mxu0 0.0
    %946 = vmatprep.subr.mxu0 0.0
    %947 = vmatpush1.msra.mxu0 0.0
    %948 = vmatprep.subr.mxu0 0.0
    %949 = vmatpush1.msra.mxu0 0.0
    %950 = vmatprep.subr.mxu0 0.0
    %951 = vmatpush1.msra.mxu0 0.0
    %952 = vmatprep.subr.mxu0 0.0
    %953 = vmatpush1.msra.mxu0 0.0
    %954 = vmatprep.subr.mxu0 0.0
    %955 = vmatpush1.msra.mxu0 0.0
    %956 = vmatprep.subr.mxu0 0.0
    %957 = vmatpush1.msra.mxu0 0.0
    %958 = vmatprep.subr.mxu0 0.0
    %959 = vmatpush1.msra.mxu0 0.0
    %960 = vmatprep.subr.mxu0 0.0
    %961 = vmatpush1.msra.mxu0 0.0
    %962 = vmatprep.subr.mxu0 0.0
    %963 = vmatpush1.msra.mxu0 0.0
    %964 = vmatprep.subr.mxu0 0.0
    %965 = vmatpush1.msra.mxu0 %v932
    %966 = vmatprep.subr.mxu0 0.0
    %967 = vmatpush2.msra.mxu0 0.0
    %968 = vmatprep.subr.mxu0 0.0
    %969 = vmatpush2.msra.mxu0 0.0
    %970 = vmatprep.subr.mxu0 0.0
    %971 = vmatpush2.msra.mxu0 0.0
    %972 = vmatprep.subr.mxu0 0.0
    %973 = vmatpush2.msra.mxu0 0.0
    %974 = vmatprep.subr.mxu0 0.0
    %975 = vmatpush2.msra.mxu0 0.0
    %976 = vmatprep.subr.mxu0 0.0
    %977 = vmatpush2.msra.mxu0 0.0
    %978 = vmatprep.subr.mxu0 0.0
    %979 = vmatpush2.msra.mxu0 0.0
    %980 = vmatprep.subr.mxu0 0.0
    %981 = vmatpush2.msra.mxu0 0.0
    %982 = vmatprep.subr.mxu0 0.0
    %983 = vmatpush2.msra.mxu0 0.0
    %984 = vmatprep.subr.mxu0 0.0
    %985 = vmatpush2.msra.mxu0 0.0
    %986 = vmatprep.subr.mxu0 0.0
    %987 = vmatpush2.msra.mxu0 0.0
    %988 = vmatprep.subr.mxu0 0.0
    %989 = vmatpush2.msra.mxu0 0.0
    %990 = vmatprep.subr.mxu0 0.0
    %991 = vmatpush2.msra.mxu0 0.0
    %992 = vmatprep.subr.mxu0 0.0
    %993 = vmatpush2.msra.mxu0 0.0
    %994 = vmatprep.subr.mxu0 0.0
    %995 = vmatpush2.msra.mxu0 0.0
    %996 = vmatprep.subr.mxu0 0.0
    %997 = vmatpush2.msra.mxu0 0.0
    %998 = vmatprep.mubr.f32.mxu0 0.0
    %999 = vmatmul.mubr.f32.gmra.mxu0 %v354
    %v1000 = vpop.f32.mrf.mxu0
    %v1001 = vadd.f32 0.0, %v1000
    %v1002 = vpop.f32.mrf.mxu0
    %1003 = vdwg.mxu0
    %v1004 = vadd.f32 %v848, %v927
    %v1005 = vadd.f32 %v853, %v1001
    %v1006 = vsel %vm428, %v1004, 0.0
    %1007 = vadd.xlane.f32.xlu0 %v1006
    %v1008 = vpop.xlane.xlu0 %1007
    %v1009 = vsel %vm428, %v1005, 0.0
    %1010 = vadd.xlane.f32.xlu0 %v1009
    %v1011 = vpop.xlane.xlu0 %1010
    %v1012 = vmul.f32 %v1008, %v435
    %v1013 = vmul.f32 %v1011, %v435
    %v1014 = vsub.f32 %v1004, %v1012
    %v1015 = vsub.f32 %v1005, %v1013
    %v1016 = vmul.f32 %v1014, %v1014
    %v1017 = vmul.f32 %v1015, %v1015
    %v1018 = vsel %vm428, %v1016, 0.0
    %1019 = vadd.xlane.f32.xlu0 %v1018
    %v1020 = vpop.xlane.xlu0 %1019
    %v1021 = vsel %vm428, %v1017, 0.0
    %1022 = vadd.xlane.f32.xlu0 %v1021
    %v1023 = vpop.xlane.xlu0 %1022
    %v1024 = vmul.f32 %v1020, %v435
    %v1025 = vmul.f32 %v1023, %v435
    %v1026 = vadd.f32 %v1024, 1e-05
    %v1027 = vadd.f32 %v1025, 1e-05
    %v1028 = vrsqrt.pop %v1026
    %v1029 = vrsqrt.pop %v1027
    %v1030 = vmul.f32 %v1014, %v1028
    %v1031 = vmul.f32 %v1015, %v1029
    %v1033 = vlaneseq
    %v1034 = vshrl.u32 %v1033, 7
    %v1035 = vsub.s32 0, %v1034
    %v1036 = vrot.slane %v767, %v1035
    %v1038 = vmul.f32 %v1030, %v1036
    %v1039 = vmul.f32 %v1031, %v1036
    %v1041 = vlaneseq
    %v1042 = vshrl.u32 %v1041, 7
    %v1043 = vsub.s32 0, %v1042
    %v1044 = vrot.slane %v768, %v1043
    %v1046 = vadd.f32 %v1038, %v1044
    %v1047 = vadd.f32 %v1039, %v1044
    %v1048 = vld [vmem:[%s14] sm:$0xf]
    %v1049 = vld [vmem:[#allocation13] sm:$0xff]
    %v1050 = vld [vmem:[#allocation13 + $0x8] sm:$0xff]
    %v1051 = vld [vmem:[#allocation13 + $0x10] sm:$0xff]
    %v1052 = vld [vmem:[#allocation13 + $0x18] sm:$0xff]
    %v1054 = vsel %vm428, %v1046, 0
    %v1057 = vsel %vm428, %v1047, 0
    %1059 = vmatprep.subr.mxu0 0.0
    %1060 = vmatpush1.msra.mxu0 0.0
    %1061 = vmatprep.subr.mxu0 0.0
    %1062 = vmatpush1.msra.mxu0 0.0
    %1063 = vmatprep.subr.mxu0 0.0
    %1064 = vmatpush1.msra.mxu0 0.0
    %1065 = vmatprep.subr.mxu0 0.0
    %1066 = vmatpush1.msra.mxu0 0.0
    %1067 = vmatprep.subr.mxu0 0.0
    %1068 = vmatpush1.msra.mxu0 0.0
    %1069 = vmatprep.subr.mxu0 0.0
    %1070 = vmatpush1.msra.mxu0 0.0
    %1071 = vmatprep.subr.mxu0 0.0
    %1072 = vmatpush1.msra.mxu0 0.0
    %1073 = vmatprep.subr.mxu0 0.0
    %1074 = vmatpush1.msra.mxu0 0.0
    %1075 = vmatprep.subr.mxu0 0.0
    %1076 = vmatpush1.msra.mxu0 0.0
    %1077 = vmatprep.subr.mxu0 0.0
    %1078 = vmatpush1.msra.mxu0 0.0
    %1079 = vmatprep.subr.mxu0 0.0
    %1080 = vmatpush1.msra.mxu0 0.0
    %1081 = vmatprep.subr.mxu0 0.0
    %1082 = vmatpush1.msra.mxu0 0.0
    %1083 = vmatprep.subr.mxu0 0.0
    %1084 = vmatpush1.msra.mxu0 %v1052
    %1085 = vmatprep.subr.mxu0 0.0
    %1086 = vmatpush1.msra.mxu0 %v1051
    %1087 = vmatprep.subr.mxu0 0.0
    %1088 = vmatpush1.msra.mxu0 %v1050
    %1089 = vmatprep.subr.mxu0 0.0
    %1090 = vmatpush1.msra.mxu0 %v1049
    %1091 = vmatprep.subr.mxu0 0.0
    %1092 = vmatpush2.msra.mxu0 0.0
    %1093 = vmatprep.subr.mxu0 0.0
    %1094 = vmatpush2.msra.mxu0 0.0
    %1095 = vmatprep.subr.mxu0 0.0
    %1096 = vmatpush2.msra.mxu0 0.0
    %1097 = vmatprep.subr.mxu0 0.0
    %1098 = vmatpush2.msra.mxu0 0.0
    %1099 = vmatprep.subr.mxu0 0.0
    %1100 = vmatpush2.msra.mxu0 0.0
    %1101 = vmatprep.subr.mxu0 0.0
    %1102 = vmatpush2.msra.mxu0 0.0
    %1103 = vmatprep.subr.mxu0 0.0
    %1104 = vmatpush2.msra.mxu0 0.0
    %1105 = vmatprep.subr.mxu0 0.0
    %1106 = vmatpush2.msra.mxu0 0.0
    %1107 = vmatprep.subr.mxu0 0.0
    %1108 = vmatpush2.msra.mxu0 0.0
    %1109 = vmatprep.subr.mxu0 0.0
    %1110 = vmatpush2.msra.mxu0 0.0
    %1111 = vmatprep.subr.mxu0 0.0
    %1112 = vmatpush2.msra.mxu0 0.0
    %1113 = vmatprep.subr.mxu0 0.0
    %1114 = vmatpush2.msra.mxu0 0.0
    %1115 = vmatprep.subr.mxu0 0.0
    %1116 = vmatpush2.msra.mxu0 0.0
    %1117 = vmatprep.subr.mxu0 0.0
    %1118 = vmatpush2.msra.mxu0 0.0
    %1119 = vmatprep.subr.mxu0 0.0
    %1120 = vmatpush2.msra.mxu0 0.0
    %1121 = vmatprep.subr.mxu0 0.0
    %1122 = vmatpush2.msra.mxu0 0.0
    %1123 = vmatprep.mubr.f32.mxu0 0.0
    %1124 = vmatmul.mubr.f32.gmra.mxu0 %v1054
    %v1125 = vpop.f32.mrf.mxu0
    %v1126 = vadd.f32 0.0, %v1125
    %v1127 = vpop.f32.mrf.mxu0
    %1128 = vmatprep.mubr.f32.mxu0 0.0
    %1129 = vmatmul.mubr.f32.gmra.mxu0 %v1057
    %v1130 = vpop.f32.mrf.mxu0
    %v1131 = vadd.f32 0.0, %v1130
    %v1132 = vpop.f32.mrf.mxu0
    %1133 = vdwg.mxu0
    %v1135 = vsel %vm193, %v1048, 0
    %1137 = vmatprep.subr.mxu0 0.0
    %1138 = vmatpush1.msra.mxu0 0.0
    %1139 = vmatprep.subr.mxu0 0.0
    %1140 = vmatpush1.msra.mxu0 0.0
    %1141 = vmatprep.subr.mxu0 0.0
    %1142 = vmatpush1.msra.mxu0 0.0
    %1143 = vmatprep.subr.mxu0 0.0
    %1144 = vmatpush1.msra.mxu0 0.0
    %1145 = vmatprep.subr.mxu0 0.0
    %1146 = vmatpush1.msra.mxu0 0.0
    %1147 = vmatprep.subr.mxu0 0.0
    %1148 = vmatpush1.msra.mxu0 0.0
    %1149 = vmatprep.subr.mxu0 0.0
    %1150 = vmatpush1.msra.mxu0 0.0
    %1151 = vmatprep.subr.mxu0 0.0
    %1152 = vmatpush1.msra.mxu0 0.0
    %1153 = vmatprep.subr.mxu0 0.0
    %1154 = vmatpush1.msra.mxu0 0.0
    %1155 = vmatprep.subr.mxu0 0.0
    %1156 = vmatpush1.msra.mxu0 0.0
    %1157 = vmatprep.subr.mxu0 0.0
    %1158 = vmatpush1.msra.mxu0 0.0
    %1159 = vmatprep.subr.mxu0 0.0
    %1160 = vmatpush1.msra.mxu0 0.0
    %1161 = vmatprep.subr.mxu0 0.0
    %1162 = vmatpush1.msra.mxu0 0.0
    %1163 = vmatprep.subr.mxu0 0.0
    %1164 = vmatpush1.msra.mxu0 0.0
    %1165 = vmatprep.subr.mxu0 0.0
    %1166 = vmatpush1.msra.mxu0 0.0
    %1167 = vmatprep.subr.mxu0 0.0
    %1168 = vmatpush1.msra.mxu0 %v1135
    %1169 = vmatprep.subr.mxu0 0.0
    %1170 = vmatpush2.msra.mxu0 0.0
    %1171 = vmatprep.subr.mxu0 0.0
    %1172 = vmatpush2.msra.mxu0 0.0
    %1173 = vmatprep.subr.mxu0 0.0
    %1174 = vmatpush2.msra.mxu0 0.0
    %1175 = vmatprep.subr.mxu0 0.0
    %1176 = vmatpush2.msra.mxu0 0.0
    %1177 = vmatprep.subr.mxu0 0.0
    %1178 = vmatpush2.msra.mxu0 0.0
    %1179 = vmatprep.subr.mxu0 0.0
    %1180 = vmatpush2.msra.mxu0 0.0
    %1181 = vmatprep.subr.mxu0 0.0
    %1182 = vmatpush2.msra.mxu0 0.0
    %1183 = vmatprep.subr.mxu0 0.0
    %1184 = vmatpush2.msra.mxu0 0.0
    %1185 = vmatprep.subr.mxu0 0.0
    %1186 = vmatpush2.msra.mxu0 0.0
    %1187 = vmatprep.subr.mxu0 0.0
    %1188 = vmatpush2.msra.mxu0 0.0
    %1189 = vmatprep.subr.mxu0 0.0
    %1190 = vmatpush2.msra.mxu0 0.0
    %1191 = vmatprep.subr.mxu0 0.0
    %1192 = vmatpush2.msra.mxu0 0.0
    %1193 = vmatprep.subr.mxu0 0.0
    %1194 = vmatpush2.msra.mxu0 0.0
    %1195 = vmatprep.subr.mxu0 0.0
    %1196 = vmatpush2.msra.mxu0 0.0
    %1197 = vmatprep.subr.mxu0 0.0
    %1198 = vmatpush2.msra.mxu0 0.0
    %1199 = vmatprep.subr.mxu0 0.0
    %1200 = vmatpush2.msra.mxu0 0.0
    %1201 = vmatprep.mubr.f32.mxu0 0.0
    %1202 = vmatmul.mubr.f32.gmra.mxu0 %v188
    %v1203 = vpop.f32.mrf.mxu0
    %v1204 = vadd.f32 %v1126, %v1203
    %v1205 = vpop.f32.mrf.mxu0
    %1206 = vmatprep.mubr.f32.mxu0 0.0
    %1207 = vmatmul.mubr.f32.gmra.mxu0 %v191
    %v1208 = vpop.f32.mrf.mxu0
    %v1209 = vadd.f32 %v1131, %v1208
    %v1210 = vpop.f32.mrf.mxu0
    %1211 = vdwg.mxu0
    %v1212 = vld [vmem:[%s16] sm:$0x1]
    %v1214 = vlaneseq
    %v1215 = vshrl.u32 %v1214, 7
    %v1216 = vsub.s32 0, %v1215
    %v1217 = vrot.slane %v1212, %v1216
    %v1219 = vadd.f32 %v1204, %v1217
    %v1220 = vadd.f32 %v1209, %v1217
    %v1221 = vmax.f32 %v1219, 0.0
    %v1222 = vmax.f32 %v1220, 0.0
    %v1223 = vld [vmem:[%s17] sm:$0xff]
    %v1224 = vld [vmem:[%s17 + $0x8] sm:$0xff]
    %v1225 = vld [vmem:[%s17 + $0x10] sm:$0xff]
    %v1226 = vld [vmem:[%s17 + $0x18] sm:$0xff]
    %v1227 = vld [vmem:[%s18] sm:$0x1]
    %v1229 = vlaneseq
    %v1230 = vshrl.u32 %v1229, 7
    %v1231 = vsub.s32 0, %v1230
    %v1232 = vrot.slane %v1227, %v1231
    %v1235 = vsel %vm428, %v1221, 0
    %v1238 = vsel %vm428, %v1222, 0
    %1240 = vmatprep.subr.mxu0 0.0
    %1241 = vmatpush1.msra.mxu0 0.0
    %1242 = vmatprep.subr.mxu0 0.0
    %1243 = vmatpush1.msra.mxu0 0.0
    %1244 = vmatprep.subr.mxu0 0.0
    %1245 = vmatpush1.msra.mxu0 0.0
    %1246 = vmatprep.subr.mxu0 0.0
    %1247 = vmatpush1.msra.mxu0 0.0
    %1248 = vmatprep.subr.mxu0 0.0
    %1249 = vmatpush1.msra.mxu0 0.0
    %1250 = vmatprep.subr.mxu0 0.0
    %1251 = vmatpush1.msra.mxu0 0.0
    %1252 = vmatprep.subr.mxu0 0.0
    %1253 = vmatpush1.msra.mxu0 0.0
    %1254 = vmatprep.subr.mxu0 0.0
    %1255 = vmatpush1.msra.mxu0 0.0
    %1256 = vmatprep.subr.mxu0 0.0
    %1257 = vmatpush1.msra.mxu0 0.0
    %1258 = vmatprep.subr.mxu0 0.0
    %1259 = vmatpush1.msra.mxu0 0.0
    %1260 = vmatprep.subr.mxu0 0.0
    %1261 = vmatpush1.msra.mxu0 0.0
    %1262 = vmatprep.subr.mxu0 0.0
    %1263 = vmatpush1.msra.mxu0 0.0
    %1264 = vmatprep.subr.mxu0 0.0
    %1265 = vmatpush1.msra.mxu0 %v1226
    %1266 = vmatprep.subr.mxu0 0.0
    %1267 = vmatpush1.msra.mxu0 %v1225
    %1268 = vmatprep.subr.mxu0 0.0
    %1269 = vmatpush1.msra.mxu0 %v1224
    %1270 = vmatprep.subr.mxu0 0.0
    %1271 = vmatpush1.msra.mxu0 %v1223
    %1272 = vmatprep.subr.mxu0 0.0
    %1273 = vmatpush2.msra.mxu0 0.0
    %1274 = vmatprep.subr.mxu0 0.0
    %1275 = vmatpush2.msra.mxu0 0.0
    %1276 = vmatprep.subr.mxu0 0.0
    %1277 = vmatpush2.msra.mxu0 0.0
    %1278 = vmatprep.subr.mxu0 0.0
    %1279 = vmatpush2.msra.mxu0 0.0
    %1280 = vmatprep.subr.mxu0 0.0
    %1281 = vmatpush2.msra.mxu0 0.0
    %1282 = vmatprep.subr.mxu0 0.0
    %1283 = vmatpush2.msra.mxu0 0.0
    %1284 = vmatprep.subr.mxu0 0.0
    %1285 = vmatpush2.msra.mxu0 0.0
    %1286 = vmatprep.subr.mxu0 0.0
    %1287 = vmatpush2.msra.mxu0 0.0
    %1288 = vmatprep.subr.mxu0 0.0
    %1289 = vmatpush2.msra.mxu0 0.0
    %1290 = vmatprep.subr.mxu0 0.0
    %1291 = vmatpush2.msra.mxu0 0.0
    %1292 = vmatprep.subr.mxu0 0.0
    %1293 = vmatpush2.msra.mxu0 0.0
    %1294 = vmatprep.subr.mxu0 0.0
    %1295 = vmatpush2.msra.mxu0 0.0
    %1296 = vmatprep.subr.mxu0 0.0
    %1297 = vmatpush2.msra.mxu0 0.0
    %1298 = vmatprep.subr.mxu0 0.0
    %1299 = vmatpush2.msra.mxu0 0.0
    %1300 = vmatprep.subr.mxu0 0.0
    %1301 = vmatpush2.msra.mxu0 0.0
    %1302 = vmatprep.subr.mxu0 0.0
    %1303 = vmatpush2.msra.mxu0 0.0
    %1304 = vmatprep.mubr.f32.mxu0 0.0
    %1305 = vmatmul.mubr.f32.gmra.mxu0 %v1235
    %v1306 = vpop.f32.mrf.mxu0
    %v1307 = vadd.f32 %v1232, %v1306
    %v1308 = vpop.f32.mrf.mxu0
    %1309 = vmatprep.mubr.f32.mxu0 0.0
    %1310 = vmatmul.mubr.f32.gmra.mxu0 %v1238
    %v1311 = vpop.f32.mrf.mxu0
    %v1312 = vadd.f32 %v1232, %v1311
    %v1313 = vpop.f32.mrf.mxu0
    %1314 = vdwg.mxu0
    %1315 = vst.msk [vmem:[%s19] sm:$0xff] %vm186, %v1307
    %1316 = vst.msk [vmem:[%s19 + $0x8] sm:$0xff] %vm186, %v1312
    // Predicated region
    $region110: #{gcnetwork_forward.1} parent=1 // pred_check
      _
    $region111: #{gcnetwork_forward.1} parent=1 // pred_check_branch
      %1318 = sbr.rel (0) target = $region113
    $region112: #{gcnetwork_forward.1} parent=1 // pred_region
      _
    $region113: #{gcnetwork_forward.1} parent=1 // pred_fallthru
      _
    // Predicated region
    $region114: #{gcnetwork_forward.1} parent=1 // pred_check
      _
    $region115: #{gcnetwork_forward.1} parent=1 // pred_check_branch
      %1320 = sbr.rel (0) target = $region117
    $region116: #{gcnetwork_forward.1} parent=1 // pred_region
      _
    $region117: #{gcnetwork_forward.1} parent=1 // pred_fallthru
      _
    %1321 = vsyncpa [#allocation3], 1
    %1322 = vsyncpa [#allocation5], 1
    %1323 = vsyncpa [#allocation8], 1
    %1324 = vsyncpa [#allocation11], 1
    %1325 = vsyncpa [#allocation14], 1

</llo_original>
